<compile_context>
chip_gen: v7x
topology: tpu7x:2x2x1
jax: 0.10.0
libtpu: 0.0.40
codegen_flags: <defaults>
</compile_context>

<pallas_src>
import functools

import jax
import jax.numpy as jnp
from jax import lax
from jax.experimental import pallas as pl
from jax.experimental.pallas import tpu as pltpu


# --------------------------------------------------------------------------
# Stage 1: GRU recurrence + attention  ->  tmp = [c_local, c_global] @ B_w
# --------------------------------------------------------------------------
def narm_encoder_kernel(embs_ref, mrec_ref, matt_ref,
                        wih3_ref, whh3_ref, bih3_ref, bhn_ref,
                        a1_ref, a2_ref, vt_ref, bw1_ref, bw2_ref,
                        tmp_ref, gru_out_ref, *, T, B):
    H = whh3_ref.shape[0]

    # Hoisted, fused input projection: one (T*B, E) @ (E, 3H) matmul for all
    # gates / timesteps (r|z biases folded, b_in kept separate per GRU eqs).
    gx = (jnp.dot(embs_ref[...], wih3_ref[...],
                  preferred_element_type=jnp.float32) + bih3_ref[...])   # (T*B, 3H)

    whh3 = whh3_ref[...]            # (H, 3H) fused recurrent weight
    bhn = bhn_ref[...]              # (1, H)
    mrec = mrec_ref[...]            # (T*B, 1) lengths-derived packing mask

    def gru_cell(h, gx_t, m_t):
        # One MXU round trip per step (was three dependent small matmuls).
        gh = jnp.dot(h, whh3, preferred_element_type=jnp.float32)        # (B, 3H)
        r = jax.nn.sigmoid(gx_t[:, 0:H] + gh[:, 0:H])
        z = jax.nn.sigmoid(gx_t[:, H:2 * H] + gh[:, H:2 * H])
        n = jnp.tanh(gx_t[:, 2 * H:3 * H] + r * (gh[:, 2 * H:3 * H] + bhn))
        h_new = (1.0 - z) * n + z * h
        out = m_t * h_new                          # pad_packed_sequence zeros pads
        return out + (1.0 - m_t) * h, out          # freeze hidden past length

    h = jnp.zeros((B, H), jnp.float32)
    if T <= 64:
        # Fully unrolled (T is compile-time): static 2-D row slices, no
        # (T, B, ·) relayouts, scheduler sees the whole dependence chain.
        for t in range(T):
            lo, hi = t * B, (t + 1) * B
            h, out = gru_cell(h, gx[lo:hi], mrec[lo:hi])
            gru_out_ref[lo:hi, :] = out
        ht = h
    else:
        def rec_body(t, h_c):
            i = pl.multiple_of(t * B, B)
            gx_t = lax.dynamic_slice(gx, (i, 0), (B, 3 * H))
            m_t = lax.dynamic_slice(mrec, (i, 0), (B, 1))
            h_n, out = gru_cell(h_c, gx_t, m_t)
            gru_out_ref[pl.ds(i, B), :] = out
            return h_n
        ht = lax.fori_loop(0, T, rec_body, h)

    # ---- NARM attention (local encoder), all 2-D (T*B, H). ----
    gru_out = gru_out_ref[...]                     # (T*B, H)
    matt = matt_ref[...]                           # (T*B, 1) attention mask (seq>0)
    vt = vt_ref[...]                               # (1, H)
    q1 = jnp.dot(gru_out, a1_ref[...], preferred_element_type=jnp.float32)
    q2 = jnp.dot(ht, a2_ref[...], preferred_element_type=jnp.float32)    # (B, H)

    def att_term(q1_t, m_t, go_t):
        s = jax.nn.sigmoid(q1_t + m_t * q2)
        # width-1 v_t projection as VPU multiply + lane reduction (no 1-col MXU)
        alpha = jnp.sum(s * vt, axis=-1, keepdims=True)                  # (B, 1)
        return alpha * go_t

    if T <= 64:
        c_local = jnp.zeros((B, H), jnp.float32)
        for t in range(T):
            lo, hi = t * B, (t + 1) * B
            c_local = c_local + att_term(q1[lo:hi], matt[lo:hi], gru_out[lo:hi])
    else:
        def att_body(t, acc):
            i = pl.multiple_of(t * B, B)
            return acc + att_term(lax.dynamic_slice(q1, (i, 0), (B, H)),
                                  lax.dynamic_slice(matt, (i, 0), (B, 1)),
                                  lax.dynamic_slice(gru_out, (i, 0), (B, H)))
        c_local = lax.fori_loop(0, T, att_body, jnp.zeros((B, H), jnp.float32))

    # tmp = [c_local, c_global] @ B_w  (B_w split in halves -> no concat)
    tmp_ref[...] = (
        jnp.dot(c_local, bw1_ref[...], preferred_element_type=jnp.float32)
        + jnp.dot(ht, bw2_ref[...], preferred_element_type=jnp.float32))


# --------------------------------------------------------------------------
# Stage 2: scores = tmp @ item_table_T, grid-tiled over the catalog.
# --------------------------------------------------------------------------
def narm_scoring_kernel(tmp_ref, item_ref, scores_ref):
    # tmp: (B, E) resident; item: (E, TILE_N) K-major streamed tile (no
    # per-tile transpose); scores: (B, TILE_N) lane-dense output.
    scores_ref[...] = jnp.dot(tmp_ref[...], item_ref[...],
                              preferred_element_type=jnp.float32)


def _vmem_capacity_bytes():
    try:
        return int(pltpu.get_tpu_info().vmem_capacity_bytes)
    except Exception:
        return 64 * 1024 * 1024          # conservative (v7x-sized) fallback


# --------------------------------------------------------------------------
# Wrapper
# --------------------------------------------------------------------------
def narm_forward(seq, lengths, params):
    """seq: (B, T) int32, right-padded with 0; lengths: (B,) int32 (sorted
    descending, matching pack_padded_sequence's convention)."""
    p = params
    B, T = seq.shape
    E = p["wih3"].shape[0]
    H = p["whh3"].shape[0]
    n_items_p1 = p["n_items_p1"]
    n_pad = p["emb_t"].shape[1]                    # catalog padded to 128 cols

    # glue (wrapper-side layout plumbing): embedding gather, time-major
    # flatten to 2-D so the kernel never reshapes (T, B, ·) tensors.
    embs_2d = jnp.transpose(p["emb"][seq], (1, 0, 2)).reshape(T * B, E)
    pos = jnp.arange(T, dtype=lengths.dtype)[None, :]
    mrec = jnp.transpose((pos < lengths[:, None])
                         .astype(jnp.float32)).reshape(T * B, 1)   # packing mask
    matt = jnp.transpose((seq > 0).astype(jnp.float32)).reshape(T * B, 1)

    vmem = pl.BlockSpec(memory_space=pltpu.MemorySpace.VMEM)
    tmp = pl.pallas_call(
        functools.partial(narm_encoder_kernel, T=T, B=B),
        out_shape=jax.ShapeDtypeStruct((B, E), jnp.float32),
        in_specs=[vmem] * 12,
        out_specs=vmem,
        scratch_shapes=[pltpu.VMEM((T * B, H), jnp.float32)],
        # raise v5e's 16 MiB scoped-VMEM default; harmless elsewhere.
        compiler_params=pltpu.CompilerParams(vmem_limit_bytes=32 * 1024 * 1024),
    )(embs_2d, mrec, matt,
      p["wih3"], p["whh3"], p["bih3"], p["bhn"],
      p["a1"], p["a2"], p["vt"], p["bw1"], p["bw2"])
    # TODO(synk): for production B (>=128) give the encoder a 'parallel' grid
    # axis over batch blocks so v7x's second TensorCore participates.

    # --- streamed, lane-dense, K-major item-scoring GEMM ---
    table_t = p["emb_t"]                           # (E, n_pad), pre-cast at init
    tmp_s = tmp.astype(table_t.dtype)

    itemsize = jnp.dtype(table_t.dtype).itemsize
    bytes_per_col = E * itemsize
    vmem_cap = _vmem_capacity_bytes()
    if vmem_cap >= 96 * 1024 * 1024:               # v5e/v6e: 128 MiB VMEM
        buf_budget, score_vmem_limit = 8 * 1024 * 1024, 48 * 1024 * 1024
    else:                                          # v7x: 64 MiB physical
        buf_budget, score_vmem_limit = 4 * 1024 * 1024, 32 * 1024 * 1024
    max_cols = max(128, (buf_budget // bytes_per_col) // 128 * 128)
    tile_n = 128
    for cand in (16384, 8192, 4096, 2048, 1024, 512, 256, 128):
        if cand <= max_cols and n_pad % cand == 0:
            tile_n = cand
            break

    scores_pad = pl.pallas_call(
        narm_scoring_kernel,
        out_shape=jax.ShapeDtypeStruct((B, n_pad), jnp.float32),
        grid_spec=pltpu.PrefetchScalarGridSpec(
            num_scalar_prefetch=0,
            grid=(n_pad // tile_n,),
            in_specs=[pl.BlockSpec((B, E), lambda j: (0, 0)),
                      pl.BlockSpec((E, tile_n), lambda j: (0, j))],
            out_specs=pl.BlockSpec((B, tile_n), lambda j: (0, j))),
        compiler_params=pltpu.CompilerParams(
            dimension_semantics=("parallel",),     # shard stream over v7x's 2 TCs
            vmem_limit_bytes=score_vmem_limit),
    )(tmp_s, table_t)
    return scores_pad[:, :n_items_p1]


# --------------------------------------------------------------------------
# Pure-JAX reference mirroring the PyTorch eval-mode forward (raw layouts).
# --------------------------------------------------------------------------
def narm_reference(seq, lengths, params):
    r = params["_raw"]
    B, T = seq.shape
    H = r["w_hh"].shape[1]
    emb = r["emb"]                                             # (N+1, E)
    embs = emb[seq]                                            # (B, T, E)
    pos = jnp.arange(T, dtype=lengths.dtype)[None, :]
    mask_rec = (pos < lengths[:, None]).astype(jnp.float32)    # packing mask
    mask_att = (seq > 0).astype(jnp.float32)                   # attention mask

    w_ih, w_hh, b_ih, b_hh = r["w_ih"], r["w_hh"], r["b_ih"], r["b_hh"]

    def step(h, xm):
        x, m = xm
        gi = x @ w_ih.T + b_ih
        gh = h @ w_hh.T + b_hh
        rg = jax.nn.sigmoid(gi[:, :H] + gh[:, :H])
        zg = jax.nn.sigmoid(gi[:, H:2 * H] + gh[:, H:2 * H])
        ng = jnp.tanh(gi[:, 2 * H:] + rg * gh[:, 2 * H:])
        h_new = (1.0 - zg) * ng + zg * h
        m = m[:, None]
        return m * h_new + (1.0 - m) * h, m * h_new

    h0 = jnp.zeros((B, H), jnp.float32)
    ht, outs = lax.scan(step, h0,
                        (jnp.transpose(embs, (1, 0, 2)), mask_rec.T))
    gru_out = jnp.transpose(outs, (1, 0, 2))                   # (B, T, H)

    q1 = gru_out @ r["a1"].T
    q2 = ht @ r["a2"].T
    s = jax.nn.sigmoid(q1 + mask_att[:, :, None] * q2[:, None, :])
    alpha = jnp.sum(s * r["vt"][None, :, :], axis=-1)          # (B, T)
    c_local = jnp.sum(alpha[:, :, None] * gru_out, axis=1)
    c_t = jnp.concatenate([c_local, ht], axis=1)
    return c_t @ r["b"] @ emb.T


# --------------------------------------------------------------------------
# Parameter construction (PyTorch layouts -> kernel layouts, done once).
# --------------------------------------------------------------------------
def init_params(key, n_items, hidden_size, embedding_dim,
                scoring_dtype=jnp.float32):
    H, E = hidden_size, embedding_dim
    ks = jax.random.split(key, 9)
    scale = 0.1
    n_items_p1 = n_items + 1
    n_pad = ((n_items_p1 + 127) // 128) * 128      # lane-dense score columns

    emb_w = scale * jax.random.normal(ks[0], (n_items_p1, E), jnp.float32)
    emb_w = emb_w.at[0].set(0.0)                   # padding_idx=0
    # K-major (E, n_pad) scoring table, padded cols zero, pre-cast ONCE.
    emb_t = (jnp.zeros((E, n_pad), jnp.float32)
             .at[:, :n_items_p1].set(emb_w.T)).astype(scoring_dtype)

    w_ih = scale * jax.random.normal(ks[1], (3 * H, E), jnp.float32)   # PyTorch
    w_hh = scale * jax.random.normal(ks[2], (3 * H, H), jnp.float32)   # layouts
    b_ih = scale * jax.random.normal(ks[3], (3 * H,), jnp.float32)
    b_hh = scale * jax.random.normal(ks[4], (3 * H,), jnp.float32)
    a1_w = scale * jax.random.normal(ks[5], (H, H), jnp.float32)
    a2_w = scale * jax.random.normal(ks[6], (H, H), jnp.float32)
    vt_w = scale * jax.random.normal(ks[7], (1, H), jnp.float32)
    b_w = scale * jax.random.normal(ks[8], (2 * H, E), jnp.float32)

    # Fused gate weights (r|z|n column blocks) for x @ W_ih3 and h @ W_hh3.
    # b_ih + b_hh folded for r/z; b_in / b_hn kept separate (n gate needs
    # r * (W_hn h + b_hn)).
    bih3 = jnp.concatenate([b_ih[0:H] + b_hh[0:H],
                            b_ih[H:2 * H] + b_hh[H:2 * H],
                            b_ih[2 * H:3 * H]]).reshape(1, 3 * H)

    return dict(
        n_items_p1=n_items_p1,
        emb=emb_w,                                  # (N+1, E) f32, for gather
        emb_t=emb_t,                                # (E, n_pad) scoring table
        wih3=w_ih.T,                                # (E, 3H)
        whh3=w_hh.T,                                # (H, 3H)
        bih3=bih3,                                  # (1, 3H)
        bhn=b_hh[2 * H:3 * H].reshape(1, H),        # (1, H)
        a1=a1_w.T, a2=a2_w.T,
        vt=vt_w,                                    # (1, H)
        bw1=b_w[0:H], bw2=b_w[H:2 * H],             # (H, E) each
        _raw=dict(emb=emb_w, w_ih=w_ih, w_hh=w_hh, b_ih=b_ih, b_hh=b_hh,
                  a1=a1_w, a2=a2_w, vt=vt_w, b=b_w),
    )


if __name__ == "__main__":
    n_items, hidden_size, embedding_dim = 50, 32, 32
    B, T = 2, 8

    key = jax.random.PRNGKey(0)
    kp, ks = jax.random.split(key)
    # scoring_dtype=jnp.bfloat16 halves streamed catalog bytes on v5e/v6e/v7x
    # (scoring is HBM-bandwidth bound); f32 here to keep the exact check.
    params = init_params(kp, n_items, hidden_size, embedding_dim,
                         scoring_dtype=jnp.float32)

    # right-padded sequences, sorted by descending length (pack_padded conv.)
    lengths = jnp.array([8, 5], dtype=jnp.int32)
    raw = jax.random.randint(ks, (B, T), 1, n_items + 1, dtype=jnp.int32)
    pos = jnp.arange(T)[None, :]
    seq = jnp.where(pos < lengths[:, None], raw, 0)

    fwd = jax.jit(functools.partial(narm_forward, params=params))
    scores = jax.block_until_ready(fwd(seq, lengths))

    ref = narm_reference(seq, lengths, params)
    assert scores.shape == (B, n_items + 1)
    max_err = float(jnp.max(jnp.abs(scores - ref)))
    assert jnp.allclose(scores, ref, atol=1e-4, rtol=1e-4), max_err

    print("KERNEL_OK")
</pallas_src>

<mosaic_0001>
module attributes {stable_mosaic.version = 11 : i64} {
  func.func @narm_scoring_kernel(%arg0: i32, %arg1: memref<2x32xf32, #tpu.memory_space<vmem>>, %arg2: memref<32x128xf32, #tpu.memory_space<vmem>>, %arg3: memref<2x128xf32, #tpu.memory_space<vmem>>) attributes {dimension_semantics = [#tpu.dimension_semantics<parallel>], iteration_bounds = array<i64: 1>, scalar_prefetch = 0 : i64, scratch_operands = 0 : i64, tpu.core_type = #tpu.core_type<tc>, window_params = [{pipeline_mode = #tpu.pipeline_mode<synchronous>, transform_indices = @transform_0, window_bounds = array<i64: 2, 32>}, {transform_indices = @transform_1, window_bounds = array<i64: 32, 128>}, {transform_indices = @transform_2, window_bounds = array<i64: 2, 128>}]} {
    %c0 = arith.constant 0 : index
    %c0_0 = arith.constant 0 : index
    %0 = vector.load %arg1[%c0, %c0_0] : memref<2x32xf32, #tpu.memory_space<vmem>>, vector<2x32xf32>
    %c0_1 = arith.constant 0 : index
    %c0_2 = arith.constant 0 : index
    %1 = vector.load %arg2[%c0_1, %c0_2] : memref<32x128xf32, #tpu.memory_space<vmem>>, vector<32x128xf32>
    %cst = arith.constant dense<0.000000e+00> : vector<2x128xf32>
    %2 = tpu.matmul %0, %1, %cst {dimension_numbers = #tpu.dot_dimension_numbers<[1], [0], [0], [1], [0, 0, 1, 1], [], []>} : vector<2x32xf32>, vector<32x128xf32>, vector<2x128xf32> -> vector<2x128xf32>
    %c0_3 = arith.constant 0 : index
    %c0_4 = arith.constant 0 : index
    %3 = vector.load %arg3[%c0_3, %c0_4] : memref<2x128xf32, #tpu.memory_space<vmem>>, vector<2x128xf32>
    tpu.vector_store %arg3[%c0_3, %c0_4], %2 {strides = array<i32>} : memref<2x128xf32, #tpu.memory_space<vmem>>, vector<2x128xf32>,
    return
  }
  func.func @transform_0(%arg0: i32) -> (i32, i32) {
    %c0_i32 = arith.constant 0 : i32
    %c0_i32_0 = arith.constant 0 : i32
    %c0_i32_1 = arith.constant 0 : i32
    return %c0_i32, %c0_i32_0 : i32, i32
  }
  func.func @transform_1(%arg0: i32) -> (i32, i32) {
    %c0_i32 = arith.constant 0 : i32
    %c0_i32_0 = arith.constant 0 : i32
    return %c0_i32, %arg0 : i32, i32
  }
  func.func @transform_2(%arg0: i32) -> (i32, i32) {
    %c0_i32 = arith.constant 0 : i32
    %c0_i32_0 = arith.constant 0 : i32
    return %c0_i32, %arg0 : i32, i32
  }
}

module attributes {stable_mosaic.version = 11 : i64} {
  func.func @narm_encoder_kernel(%arg0: memref<16x32xf32, #tpu.memory_space<vmem>>, %arg1: memref<16x1xf32, #tpu.memory_space<vmem>>, %arg2: memref<16x1xf32, #tpu.memory_space<vmem>>, %arg3: memref<32x96xf32, #tpu.memory_space<vmem>>, %arg4: memref<32x96xf32, #tpu.memory_space<vmem>>, %arg5: memref<1x96xf32, #tpu.memory_space<vmem>>, %arg6: memref<1x32xf32, #tpu.memory_space<vmem>>, %arg7: memref<32x32xf32, #tpu.memory_space<vmem>>, %arg8: memref<32x32xf32, #tpu.memory_space<vmem>>, %arg9: memref<1x32xf32, #tpu.memory_space<vmem>>, %arg10: memref<32x32xf32, #tpu.memory_space<vmem>>, %arg11: memref<32x32xf32, #tpu.memory_space<vmem>>, %arg12: memref<2x32xf32, #tpu.memory_space<vmem>>, %arg13: memref<16x32xf32, #tpu.memory_space<vmem>>) attributes {dimension_semantics = [], scalar_prefetch = 0 : i64, scratch_operands = 1 : i64, tpu.core_type = #tpu.core_type<tc>} {
    %c0 = arith.constant 0 : index
    %c0_0 = arith.constant 0 : index
    %0 = vector.load %arg0[%c0, %c0_0] : memref<16x32xf32, #tpu.memory_space<vmem>>, vector<16x32xf32>
    %c0_1 = arith.constant 0 : index
    %c0_2 = arith.constant 0 : index
    %1 = vector.load %arg3[%c0_1, %c0_2] : memref<32x96xf32, #tpu.memory_space<vmem>>, vector<32x96xf32>
    %cst = arith.constant dense<0.000000e+00> : vector<16x96xf32>
    %2 = tpu.matmul %0, %1, %cst {dimension_numbers = #tpu.dot_dimension_numbers<[1], [0], [0], [1], [0, 0, 1, 1], [], []>} : vector<16x32xf32>, vector<32x96xf32>, vector<16x96xf32> -> vector<16x96xf32>
    %c0_3 = arith.constant 0 : index
    %c0_4 = arith.constant 0 : index
    %3 = vector.load %arg5[%c0_3, %c0_4] : memref<1x96xf32, #tpu.memory_space<vmem>>, vector<1x96xf32>
    %4 = vector.broadcast %3 : vector<1x96xf32> to vector<16x96xf32>
    %5 = arith.addf %2, %4 : vector<16x96xf32>
    %c0_5 = arith.constant 0 : index
    %c0_6 = arith.constant 0 : index
    %6 = vector.load %arg4[%c0_5, %c0_6] : memref<32x96xf32, #tpu.memory_space<vmem>>, vector<32x96xf32>
    %c0_7 = arith.constant 0 : index
    %c0_8 = arith.constant 0 : index
    %7 = vector.load %arg6[%c0_7, %c0_8] : memref<1x32xf32, #tpu.memory_space<vmem>>, vector<1x32xf32>
    %c0_9 = arith.constant 0 : index
    %c0_10 = arith.constant 0 : index
    %8 = vector.load %arg1[%c0_9, %c0_10] : memref<16x1xf32, #tpu.memory_space<vmem>>, vector<16x1xf32>
    %cst_11 = arith.constant 0.000000e+00 : f32
    %9 = vector.broadcast %cst_11 : f32 to vector<2x32xf32>
    %10 = vector.extract_strided_slice %5 {offsets = [0, 0], sizes = [2, 96], strides = [1, 1]} : vector<16x96xf32> to vector<2x96xf32>
    %11 = vector.extract_strided_slice %8 {offsets = [0, 0], sizes = [2, 1], strides = [1, 1]} : vector<16x1xf32> to vector<2x1xf32>
    %cst_12 = arith.constant dense<0.000000e+00> : vector<2x96xf32>
    %12 = tpu.matmul %9, %6, %cst_12 {dimension_numbers = #tpu.dot_dimension_numbers<[1], [0], [0], [1], [0, 0, 1, 1], [], []>} : vector<2x32xf32>, vector<32x96xf32>, vector<2x96xf32> -> vector<2x96xf32>
    %13 = vector.extract_strided_slice %10 {offsets = [0, 0], sizes = [2, 32], strides = [1, 1]} : vector<2x96xf32> to vector<2x32xf32>
    %14 = vector.extract_strided_slice %12 {offsets = [0, 0], sizes = [2, 32], strides = [1, 1]} : vector<2x96xf32> to vector<2x32xf32>
    %15 = arith.addf %13, %14 : vector<2x32xf32>
    %16 = arith.negf %15 : vector<2x32xf32>
    %17 = math.exp %16 : vector<2x32xf32>
    %cst_13 = arith.constant 1.000000e+00 : f32
    %18 = vector.broadcast %cst_13 : f32 to vector<2x32xf32>
    %19 = arith.addf %18, %17 : vector<2x32xf32>
    %20 = arith.divf %18, %19 : vector<2x32xf32>
    %21 = vector.extract_strided_slice %10 {offsets = [0, 32], sizes = [2, 32], strides = [1, 1]} : vector<2x96xf32> to vector<2x32xf32>
    %22 = vector.extract_strided_slice %12 {offsets = [0, 32], sizes = [2, 32], strides = [1, 1]} : vector<2x96xf32> to vector<2x32xf32>
    %23 = arith.addf %21, %22 : vector<2x32xf32>
    %24 = arith.negf %23 : vector<2x32xf32>
    %25 = math.exp %24 : vector<2x32xf32>
    %cst_14 = arith.constant 1.000000e+00 : f32
    %26 = vector.broadcast %cst_14 : f32 to vector<2x32xf32>
    %27 = arith.addf %26, %25 : vector<2x32xf32>
    %28 = arith.divf %26, %27 : vector<2x32xf32>
    %29 = vector.extract_strided_slice %10 {offsets = [0, 64], sizes = [2, 32], strides = [1, 1]} : vector<2x96xf32> to vector<2x32xf32>
    %30 = vector.extract_strided_slice %12 {offsets = [0, 64], sizes = [2, 32], strides = [1, 1]} : vector<2x96xf32> to vector<2x32xf32>
    %31 = vector.broadcast %7 : vector<1x32xf32> to vector<2x32xf32>
    %32 = arith.addf %30, %31 : vector<2x32xf32>
    %33 = arith.mulf %20, %32 : vector<2x32xf32>
    %34 = arith.addf %29, %33 : vector<2x32xf32>
    %35 = math.tanh %34 : vector<2x32xf32>
    %cst_15 = arith.constant 1.000000e+00 : f32
    %36 = vector.broadcast %cst_15 : f32 to vector<2x32xf32>
    %37 = arith.subf %36, %28 : vector<2x32xf32>
    %38 = arith.mulf %37, %35 : vector<2x32xf32>
    %39 = arith.mulf %28, %9 : vector<2x32xf32>
    %40 = arith.addf %38, %39 : vector<2x32xf32>
    %41 = vector.broadcast %11 : vector<2x1xf32> to vector<2x32xf32>
    %42 = arith.mulf %41, %40 : vector<2x32xf32>
    %cst_16 = arith.constant 1.000000e+00 : f32
    %43 = vector.broadcast %cst_16 : f32 to vector<2x1xf32>
    %44 = arith.subf %43, %11 : vector<2x1xf32>
    %45 = vector.broadcast %44 : vector<2x1xf32> to vector<2x32xf32>
    %46 = arith.mulf %45, %9 : vector<2x32xf32>
    %47 = arith.addf %42, %46 : vector<2x32xf32>
    %c0_17 = arith.constant 0 : index
    %c0_18 = arith.constant 0 : index
    %48 = vector.load %arg13[%c0_17, %c0_18] : memref<16x32xf32, #tpu.memory_space<vmem>>, vector<2x32xf32>
    tpu.vector_store %arg13[%c0_17, %c0_18], %42 {strides = array<i32>} : memref<16x32xf32, #tpu.memory_space<vmem>>, vector<2x32xf32>,
    %49 = vector.extract_strided_slice %5 {offsets = [2, 0], sizes = [2, 96], strides = [1, 1]} : vector<16x96xf32> to vector<2x96xf32>
    %50 = vector.extract_strided_slice %8 {offsets = [2, 0], sizes = [2, 1], strides = [1, 1]} : vector<16x1xf32> to vector<2x1xf32>
    %cst_19 = arith.constant dense<0.000000e+00> : vector<2x96xf32>
    %51 = tpu.matmul %47, %6, %cst_19 {dimension_numbers = #tpu.dot_dimension_numbers<[1], [0], [0], [1], [0, 0, 1, 1], [], []>} : vector<2x32xf32>, vector<32x96xf32>, vector<2x96xf32> -> vector<2x96xf32>
    %52 = vector.extract_strided_slice %49 {offsets = [0, 0], sizes = [2, 32], strides = [1, 1]} : vector<2x96xf32> to vector<2x32xf32>
    %53 = vector.extract_strided_slice %51 {offsets = [0, 0], sizes = [2, 32], strides = [1, 1]} : vector<2x96xf32> to vector<2x32xf32>
    %54 = arith.addf %52, %53 : vector<2x32xf32>
    %55 = arith.negf %54 : vector<2x32xf32>
    %56 = math.exp %55 : vector<2x32xf32>
    %cst_20 = arith.constant 1.000000e+00 : f32
    %57 = vector.broadcast %cst_20 : f32 to vector<2x32xf32>
    %58 = arith.addf %57, %56 : vector<2x32xf32>
    %59 = arith.divf %57, %58 : vector<2x32xf32>
    %60 = vector.extract_strided_slice %49 {offsets = [0, 32], sizes = [2, 32], strides = [1, 1]} : vector<2x96xf32> to vector<2x32xf32>
    %61 = vector.extract_strided_slice %51 {offsets = [0, 32], sizes = [2, 32], strides = [1, 1]} : vector<2x96xf32> to vector<2x32xf32>
    %62 = arith.addf %60, %61 : vector<2x32xf32>
    %63 = arith.negf %62 : vector<2x32xf32>
    %64 = math.exp %63 : vector<2x32xf32>
    %cst_21 = arith.constant 1.000000e+00 : f32
    %65 = vector.broadcast %cst_21 : f32 to vector<2x32xf32>
    %66 = arith.addf %65, %64 : vector<2x32xf32>
    %67 = arith.divf %65, %66 : vector<2x32xf32>
    %68 = vector.extract_strided_slice %49 {offsets = [0, 64], sizes = [2, 32], strides = [1, 1]} : vector<2x96xf32> to vector<2x32xf32>
    %69 = vector.extract_strided_slice %51 {offsets = [0, 64], sizes = [2, 32], strides = [1, 1]} : vector<2x96xf32> to vector<2x32xf32>
    %70 = vector.broadcast %7 : vector<1x32xf32> to vector<2x32xf32>
    %71 = arith.addf %69, %70 : vector<2x32xf32>
    %72 = arith.mulf %59, %71 : vector<2x32xf32>
    %73 = arith.addf %68, %72 : vector<2x32xf32>
    %74 = math.tanh %73 : vector<2x32xf32>
    %cst_22 = arith.constant 1.000000e+00 : f32
    %75 = vector.broadcast %cst_22 : f32 to vector<2x32xf32>
    %76 = arith.subf %75, %67 : vector<2x32xf32>
    %77 = arith.mulf %76, %74 : vector<2x32xf32>
    %78 = arith.mulf %67, %47 : vector<2x32xf32>
    %79 = arith.addf %77, %78 : vector<2x32xf32>
    %80 = vector.broadcast %50 : vector<2x1xf32> to vector<2x32xf32>
    %81 = arith.mulf %80, %79 : vector<2x32xf32>
    %cst_23 = arith.constant 1.000000e+00 : f32
    %82 = vector.broadcast %cst_23 : f32 to vector<2x1xf32>
    %83 = arith.subf %82, %50 : vector<2x1xf32>
    %84 = vector.broadcast %83 : vector<2x1xf32> to vector<2x32xf32>
    %85 = arith.mulf %84, %47 : vector<2x32xf32>
    %86 = arith.addf %81, %85 : vector<2x32xf32>
    %c2 = arith.constant 2 : index
    %c0_24 = arith.constant 0 : index
    %87 = vector.load %arg13[%c2, %c0_24] : memref<16x32xf32, #tpu.memory_space<vmem>>, vector<2x32xf32>
    tpu.vector_store %arg13[%c2, %c0_24], %81 {strides = array<i32>} : memref<16x32xf32, #tpu.memory_space<vmem>>, vector<2x32xf32>,
    %88 = vector.extract_strided_slice %5 {offsets = [4, 0], sizes = [2, 96], strides = [1, 1]} : vector<16x96xf32> to vector<2x96xf32>
    %89 = vector.extract_strided_slice %8 {offsets = [4, 0], sizes = [2, 1], strides = [1, 1]} : vector<16x1xf32> to vector<2x1xf32>
    %cst_25 = arith.constant dense<0.000000e+00> : vector<2x96xf32>
    %90 = tpu.matmul %86, %6, %cst_25 {dimension_numbers = #tpu.dot_dimension_numbers<[1], [0], [0], [1], [0, 0, 1, 1], [], []>} : vector<2x32xf32>, vector<32x96xf32>, vector<2x96xf32> -> vector<2x96xf32>
    %91 = vector.extract_strided_slice %88 {offsets = [0, 0], sizes = [2, 32], strides = [1, 1]} : vector<2x96xf32> to vector<2x32xf32>
    %92 = vector.extract_strided_slice %90 {offsets = [0, 0], sizes = [2, 32], strides = [1, 1]} : vector<2x96xf32> to vector<2x32xf32>
    %93 = arith.addf %91, %92 : vector<2x32xf32>
    %94 = arith.negf %93 : vector<2x32xf32>
    %95 = math.exp %94 : vector<2x32xf32>
    %cst_26 = arith.constant 1.000000e+00 : f32
    %96 = vector.broadcast %cst_26 : f32 to vector<2x32xf32>
    %97 = arith.addf %96, %95 : vector<2x32xf32>
    %98 = arith.divf %96, %97 : vector<2x32xf32>
    %99 = vector.extract_strided_slice %88 {offsets = [0, 32], sizes = [2, 32], strides = [1, 1]} : vector<2x96xf32> to vector<2x32xf32>
    %100 = vector.extract_strided_slice %90 {offsets = [0, 32], sizes = [2, 32], strides = [1, 1]} : vector<2x96xf32> to vector<2x32xf32>
    %101 = arith.addf %99, %100 : vector<2x32xf32>
    %102 = arith.negf %101 : vector<2x32xf32>
    %103 = math.exp %102 : vector<2x32xf32>
    %cst_27 = arith.constant 1.000000e+00 : f32
    %104 = vector.broadcast %cst_27 : f32 to vector<2x32xf32>
    %105 = arith.addf %104, %103 : vector<2x32xf32>
    %106 = arith.divf %104, %105 : vector<2x32xf32>
    %107 = vector.extract_strided_slice %88 {offsets = [0, 64], sizes = [2, 32], strides = [1, 1]} : vector<2x96xf32> to vector<2x32xf32>
    %108 = vector.extract_strided_slice %90 {offsets = [0, 64], sizes = [2, 32], strides = [1, 1]} : vector<2x96xf32> to vector<2x32xf32>
    %109 = vector.broadcast %7 : vector<1x32xf32> to vector<2x32xf32>
    %110 = arith.addf %108, %109 : vector<2x32xf32>
    %111 = arith.mulf %98, %110 : vector<2x32xf32>
    %112 = arith.addf %107, %111 : vector<2x32xf32>
    %113 = math.tanh %112 : vector<2x32xf32>
    %cst_28 = arith.constant 1.000000e+00 : f32
    %114 = vector.broadcast %cst_28 : f32 to vector<2x32xf32>
    %115 = arith.subf %114, %106 : vector<2x32xf32>
    %116 = arith.mulf %115, %113 : vector<2x32xf32>
    %117 = arith.mulf %106, %86 : vector<2x32xf32>
    %118 = arith.addf %116, %117 : vector<2x32xf32>
    %119 = vector.broadcast %89 : vector<2x1xf32> to vector<2x32xf32>
    %120 = arith.mulf %119, %118 : vector<2x32xf32>
    %cst_29 = arith.constant 1.000000e+00 : f32
    %121 = vector.broadcast %cst_29 : f32 to vector<2x1xf32>
    %122 = arith.subf %121, %89 : vector<2x1xf32>
    %123 = vector.broadcast %122 : vector<2x1xf32> to vector<2x32xf32>
    %124 = arith.mulf %123, %86 : vector<2x32xf32>
    %125 = arith.addf %120, %124 : vector<2x32xf32>
    %c4 = arith.constant 4 : index
    %c0_30 = arith.constant 0 : index
    %126 = vector.load %arg13[%c4, %c0_30] : memref<16x32xf32, #tpu.memory_space<vmem>>, vector<2x32xf32>
    tpu.vector_store %arg13[%c4, %c0_30], %120 {strides = array<i32>} : memref<16x32xf32, #tpu.memory_space<vmem>>, vector<2x32xf32>,
    %127 = vector.extract_strided_slice %5 {offsets = [6, 0], sizes = [2, 96], strides = [1, 1]} : vector<16x96xf32> to vector<2x96xf32>
    %128 = vector.extract_strided_slice %8 {offsets = [6, 0], sizes = [2, 1], strides = [1, 1]} : vector<16x1xf32> to vector<2x1xf32>
    %cst_31 = arith.constant dense<0.000000e+00> : vector<2x96xf32>
    %129 = tpu.matmul %125, %6, %cst_31 {dimension_numbers = #tpu.dot_dimension_numbers<[1], [0], [0], [1], [0, 0, 1, 1], [], []>} : vector<2x32xf32>, vector<32x96xf32>, vector<2x96xf32> -> vector<2x96xf32>
    %130 = vector.extract_strided_slice %127 {offsets = [0, 0], sizes = [2, 32], strides = [1, 1]} : vector<2x96xf32> to vector<2x32xf32>
    %131 = vector.extract_strided_slice %129 {offsets = [0, 0], sizes = [2, 32], strides = [1, 1]} : vector<2x96xf32> to vector<2x32xf32>
    %132 = arith.addf %130, %131 : vector<2x32xf32>
    %133 = arith.negf %132 : vector<2x32xf32>
    %134 = math.exp %133 : vector<2x32xf32>
    %cst_32 = arith.constant 1.000000e+00 : f32
    %135 = vector.broadcast %cst_32 : f32 to vector<2x32xf32>
    %136 = arith.addf %135, %134 : vector<2x32xf32>
    %137 = arith.divf %135, %136 : vector<2x32xf32>
    %138 = vector.extract_strided_slice %127 {offsets = [0, 32], sizes = [2, 32], strides = [1, 1]} : vector<2x96xf32> to vector<2x32xf32>
    %139 = vector.extract_strided_slice %129 {offsets = [0, 32], sizes = [2, 32], strides = [1, 1]} : vector<2x96xf32> to vector<2x32xf32>
    %140 = arith.addf %138, %139 : vector<2x32xf32>
    %141 = arith.negf %140 : vector<2x32xf32>
    %142 = math.exp %141 : vector<2x32xf32>
    %cst_33 = arith.constant 1.000000e+00 : f32
    %143 = vector.broadcast %cst_33 : f32 to vector<2x32xf32>
    %144 = arith.addf %143, %142 : vector<2x32xf32>
    %145 = arith.divf %143, %144 : vector<2x32xf32>
    %146 = vector.extract_strided_slice %127 {offsets = [0, 64], sizes = [2, 32], strides = [1, 1]} : vector<2x96xf32> to vector<2x32xf32>
    %147 = vector.extract_strided_slice %129 {offsets = [0, 64], sizes = [2, 32], strides = [1, 1]} : vector<2x96xf32> to vector<2x32xf32>
    %148 = vector.broadcast %7 : vector<1x32xf32> to vector<2x32xf32>
    %149 = arith.addf %147, %148 : vector<2x32xf32>
    %150 = arith.mulf %137, %149 : vector<2x32xf32>
    %151 = arith.addf %146, %150 : vector<2x32xf32>
    %152 = math.tanh %151 : vector<2x32xf32>
    %cst_34 = arith.constant 1.000000e+00 : f32
    %153 = vector.broadcast %cst_34 : f32 to vector<2x32xf32>
    %154 = arith.subf %153, %145 : vector<2x32xf32>
    %155 = arith.mulf %154, %152 : vector<2x32xf32>
    %156 = arith.mulf %145, %125 : vector<2x32xf32>
    %157 = arith.addf %155, %156 : vector<2x32xf32>
    %158 = vector.broadcast %128 : vector<2x1xf32> to vector<2x32xf32>
    %159 = arith.mulf %158, %157 : vector<2x32xf32>
    %cst_35 = arith.constant 1.000000e+00 : f32
    %160 = vector.broadcast %cst_35 : f32 to vector<2x1xf32>
    %161 = arith.subf %160, %128 : vector<2x1xf32>
    %162 = vector.broadcast %161 : vector<2x1xf32> to vector<2x32xf32>
    %163 = arith.mulf %162, %125 : vector<2x32xf32>
    %164 = arith.addf %159, %163 : vector<2x32xf32>
    %c6 = arith.constant 6 : index
    %c0_36 = arith.constant 0 : index
    %165 = vector.load %arg13[%c6, %c0_36] : memref<16x32xf32, #tpu.memory_space<vmem>>, vector<2x32xf32>
    tpu.vector_store %arg13[%c6, %c0_36], %159 {strides = array<i32>} : memref<16x32xf32, #tpu.memory_space<vmem>>, vector<2x32xf32>,
    %166 = vector.extract_strided_slice %5 {offsets = [8, 0], sizes = [2, 96], strides = [1, 1]} : vector<16x96xf32> to vector<2x96xf32>
    %167 = vector.extract_strided_slice %8 {offsets = [8, 0], sizes = [2, 1], strides = [1, 1]} : vector<16x1xf32> to vector<2x1xf32>
    %cst_37 = arith.constant dense<0.000000e+00> : vector<2x96xf32>
    %168 = tpu.matmul %164, %6, %cst_37 {dimension_numbers = #tpu.dot_dimension_numbers<[1], [0], [0], [1], [0, 0, 1, 1], [], []>} : vector<2x32xf32>, vector<32x96xf32>, vector<2x96xf32> -> vector<2x96xf32>
    %169 = vector.extract_strided_slice %166 {offsets = [0, 0], sizes = [2, 32], strides = [1, 1]} : vector<2x96xf32> to vector<2x32xf32>
    %170 = vector.extract_strided_slice %168 {offsets = [0, 0], sizes = [2, 32], strides = [1, 1]} : vector<2x96xf32> to vector<2x32xf32>
    %171 = arith.addf %169, %170 : vector<2x32xf32>
    %172 = arith.negf %171 : vector<2x32xf32>
    %173 = math.exp %172 : vector<2x32xf32>
    %cst_38 = arith.constant 1.000000e+00 : f32
    %174 = vector.broadcast %cst_38 : f32 to vector<2x32xf32>
    %175 = arith.addf %174, %173 : vector<2x32xf32>
    %176 = arith.divf %174, %175 : vector<2x32xf32>
    %177 = vector.extract_strided_slice %166 {offsets = [0, 32], sizes = [2, 32], strides = [1, 1]} : vector<2x96xf32> to vector<2x32xf32>
    %178 = vector.extract_strided_slice %168 {offsets = [0, 32], sizes = [2, 32], strides = [1, 1]} : vector<2x96xf32> to vector<2x32xf32>
    %179 = arith.addf %177, %178 : vector<2x32xf32>
    %180 = arith.negf %179 : vector<2x32xf32>
    %181 = math.exp %180 : vector<2x32xf32>
    %cst_39 = arith.constant 1.000000e+00 : f32
    %182 = vector.broadcast %cst_39 : f32 to vector<2x32xf32>
    %183 = arith.addf %182, %181 : vector<2x32xf32>
    %184 = arith.divf %182, %183 : vector<2x32xf32>
    %185 = vector.extract_strided_slice %166 {offsets = [0, 64], sizes = [2, 32], strides = [1, 1]} : vector<2x96xf32> to vector<2x32xf32>
    %186 = vector.extract_strided_slice %168 {offsets = [0, 64], sizes = [2, 32], strides = [1, 1]} : vector<2x96xf32> to vector<2x32xf32>
    %187 = vector.broadcast %7 : vector<1x32xf32> to vector<2x32xf32>
    %188 = arith.addf %186, %187 : vector<2x32xf32>
    %189 = arith.mulf %176, %188 : vector<2x32xf32>
    %190 = arith.addf %185, %189 : vector<2x32xf32>
    %191 = math.tanh %190 : vector<2x32xf32>
    %cst_40 = arith.constant 1.000000e+00 : f32
    %192 = vector.broadcast %cst_40 : f32 to vector<2x32xf32>
    %193 = arith.subf %192, %184 : vector<2x32xf32>
    %194 = arith.mulf %193, %191 : vector<2x32xf32>
    %195 = arith.mulf %184, %164 : vector<2x32xf32>
    %196 = arith.addf %194, %195 : vector<2x32xf32>
    %197 = vector.broadcast %167 : vector<2x1xf32> to vector<2x32xf32>
    %198 = arith.mulf %197, %196 : vector<2x32xf32>
    %cst_41 = arith.constant 1.000000e+00 : f32
    %199 = vector.broadcast %cst_41 : f32 to vector<2x1xf32>
    %200 = arith.subf %199, %167 : vector<2x1xf32>
    %201 = vector.broadcast %200 : vector<2x1xf32> to vector<2x32xf32>
    %202 = arith.mulf %201, %164 : vector<2x32xf32>
    %203 = arith.addf %198, %202 : vector<2x32xf32>
    %c8 = arith.constant 8 : index
    %c0_42 = arith.constant 0 : index
    %204 = vector.load %arg13[%c8, %c0_42] : memref<16x32xf32, #tpu.memory_space<vmem>>, vector<2x32xf32>
    tpu.vector_store %arg13[%c8, %c0_42], %198 {strides = array<i32>} : memref<16x32xf32, #tpu.memory_space<vmem>>, vector<2x32xf32>,
    %205 = vector.extract_strided_slice %5 {offsets = [10, 0], sizes = [2, 96], strides = [1, 1]} : vector<16x96xf32> to vector<2x96xf32>
    %206 = vector.extract_strided_slice %8 {offsets = [10, 0], sizes = [2, 1], strides = [1, 1]} : vector<16x1xf32> to vector<2x1xf32>
    %cst_43 = arith.constant dense<0.000000e+00> : vector<2x96xf32>
    %207 = tpu.matmul %203, %6, %cst_43 {dimension_numbers = #tpu.dot_dimension_numbers<[1], [0], [0], [1], [0, 0, 1, 1], [], []>} : vector<2x32xf32>, vector<32x96xf32>, vector<2x96xf32> -> vector<2x96xf32>
    %208 = vector.extract_strided_slice %205 {offsets = [0, 0], sizes = [2, 32], strides = [1, 1]} : vector<2x96xf32> to vector<2x32xf32>
    %209 = vector.extract_strided_slice %207 {offsets = [0, 0], sizes = [2, 32], strides = [1, 1]} : vector<2x96xf32> to vector<2x32xf32>
    %210 = arith.addf %208, %209 : vector<2x32xf32>
    %211 = arith.negf %210 : vector<2x32xf32>
    %212 = math.exp %211 : vector<2x32xf32>
    %cst_44 = arith.constant 1.000000e+00 : f32
    %213 = vector.broadcast %cst_44 : f32 to vector<2x32xf32>
    %214 = arith.addf %213, %212 : vector<2x32xf32>
    %215 = arith.divf %213, %214 : vector<2x32xf32>
    %216 = vector.extract_strided_slice %205 {offsets = [0, 32], sizes = [2, 32], strides = [1, 1]} : vector<2x96xf32> to vector<2x32xf32>
    %217 = vector.extract_strided_slice %207 {offsets = [0, 32], sizes = [2, 32], strides = [1, 1]} : vector<2x96xf32> to vector<2x32xf32>
    %218 = arith.addf %216, %217 : vector<2x32xf32>
    %219 = arith.negf %218 : vector<2x32xf32>
    %220 = math.exp %219 : vector<2x32xf32>
    %cst_45 = arith.constant 1.000000e+00 : f32
    %221 = vector.broadcast %cst_45 : f32 to vector<2x32xf32>
    %222 = arith.addf %221, %220 : vector<2x32xf32>
    %223 = arith.divf %221, %222 : vector<2x32xf32>
    %224 = vector.extract_strided_slice %205 {offsets = [0, 64], sizes = [2, 32], strides = [1, 1]} : vector<2x96xf32> to vector<2x32xf32>
    %225 = vector.extract_strided_slice %207 {offsets = [0, 64], sizes = [2, 32], strides = [1, 1]} : vector<2x96xf32> to vector<2x32xf32>
    %226 = vector.broadcast %7 : vector<1x32xf32> to vector<2x32xf32>
    %227 = arith.addf %225, %226 : vector<2x32xf32>
    %228 = arith.mulf %215, %227 : vector<2x32xf32>
    %229 = arith.addf %224, %228 : vector<2x32xf32>
    %230 = math.tanh %229 : vector<2x32xf32>
    %cst_46 = arith.constant 1.000000e+00 : f32
    %231 = vector.broadcast %cst_46 : f32 to vector<2x32xf32>
    %232 = arith.subf %231, %223 : vector<2x32xf32>
    %233 = arith.mulf %232, %230 : vector<2x32xf32>
    %234 = arith.mulf %223, %203 : vector<2x32xf32>
    %235 = arith.addf %233, %234 : vector<2x32xf32>
    %236 = vector.broadcast %206 : vector<2x1xf32> to vector<2x32xf32>
    %237 = arith.mulf %236, %235 : vector<2x32xf32>
    %cst_47 = arith.constant 1.000000e+00 : f32
    %238 = vector.broadcast %cst_47 : f32 to vector<2x1xf32>
    %239 = arith.subf %238, %206 : vector<2x1xf32>
    %240 = vector.broadcast %239 : vector<2x1xf32> to vector<2x32xf32>
    %241 = arith.mulf %240, %203 : vector<2x32xf32>
    %242 = arith.addf %237, %241 : vector<2x32xf32>
    %c10 = arith.constant 10 : index
    %c0_48 = arith.constant 0 : index
    %243 = vector.load %arg13[%c10, %c0_48] : memref<16x32xf32, #tpu.memory_space<vmem>>, vector<2x32xf32>
    tpu.vector_store %arg13[%c10, %c0_48], %237 {strides = array<i32>} : memref<16x32xf32, #tpu.memory_space<vmem>>, vector<2x32xf32>,
    %244 = vector.extract_strided_slice %5 {offsets = [12, 0], sizes = [2, 96], strides = [1, 1]} : vector<16x96xf32> to vector<2x96xf32>
    %245 = vector.extract_strided_slice %8 {offsets = [12, 0], sizes = [2, 1], strides = [1, 1]} : vector<16x1xf32> to vector<2x1xf32>
    %cst_49 = arith.constant dense<0.000000e+00> : vector<2x96xf32>
    %246 = tpu.matmul %242, %6, %cst_49 {dimension_numbers = #tpu.dot_dimension_numbers<[1], [0], [0], [1], [0, 0, 1, 1], [], []>} : vector<2x32xf32>, vector<32x96xf32>, vector<2x96xf32> -> vector<2x96xf32>
    %247 = vector.extract_strided_slice %244 {offsets = [0, 0], sizes = [2, 32], strides = [1, 1]} : vector<2x96xf32> to vector<2x32xf32>
    %248 = vector.extract_strided_slice %246 {offsets = [0, 0], sizes = [2, 32], strides = [1, 1]} : vector<2x96xf32> to vector<2x32xf32>
    %249 = arith.addf %247, %248 : vector<2x32xf32>
    %250 = arith.negf %249 : vector<2x32xf32>
    %251 = math.exp %250 : vector<2x32xf32>
    %cst_50 = arith.constant 1.000000e+00 : f32
    %252 = vector.broadcast %cst_50 : f32 to vector<2x32xf32>
    %253 = arith.addf %252, %251 : vector<2x32xf32>
    %254 = arith.divf %252, %253 : vector<2x32xf32>
    %255 = vector.extract_strided_slice %244 {offsets = [0, 32], sizes = [2, 32], strides = [1, 1]} : vector<2x96xf32> to vector<2x32xf32>
    %256 = vector.extract_strided_slice %246 {offsets = [0, 32], sizes = [2, 32], strides = [1, 1]} : vector<2x96xf32> to vector<2x32xf32>
    %257 = arith.addf %255, %256 : vector<2x32xf32>
    %258 = arith.negf %257 : vector<2x32xf32>
    %259 = math.exp %258 : vector<2x32xf32>
    %cst_51 = arith.constant 1.000000e+00 : f32
    %260 = vector.broadcast %cst_51 : f32 to vector<2x32xf32>
    %261 = arith.addf %260, %259 : vector<2x32xf32>
    %262 = arith.divf %260, %261 : vector<2x32xf32>
    %263 = vector.extract_strided_slice %244 {offsets = [0, 64], sizes = [2, 32], strides = [1, 1]} : vector<2x96xf32> to vector<2x32xf32>
    %264 = vector.extract_strided_slice %246 {offsets = [0, 64], sizes = [2, 32], strides = [1, 1]} : vector<2x96xf32> to vector<2x32xf32>
    %265 = vector.broadcast %7 : vector<1x32xf32> to vector<2x32xf32>
    %266 = arith.addf %264, %265 : vector<2x32xf32>
    %267 = arith.mulf %254, %266 : vector<2x32xf32>
    %268 = arith.addf %263, %267 : vector<2x32xf32>
    %269 = math.tanh %268 : vector<2x32xf32>
    %cst_52 = arith.constant 1.000000e+00 : f32
    %270 = vector.broadcast %cst_52 : f32 to vector<2x32xf32>
    %271 = arith.subf %270, %262 : vector<2x32xf32>
    %272 = arith.mulf %271, %269 : vector<2x32xf32>
    %273 = arith.mulf %262, %242 : vector<2x32xf32>
    %274 = arith.addf %272, %273 : vector<2x32xf32>
    %275 = vector.broadcast %245 : vector<2x1xf32> to vector<2x32xf32>
    %276 = arith.mulf %275, %274 : vector<2x32xf32>
    %cst_53 = arith.constant 1.000000e+00 : f32
    %277 = vector.broadcast %cst_53 : f32 to vector<2x1xf32>
    %278 = arith.subf %277, %245 : vector<2x1xf32>
    %279 = vector.broadcast %278 : vector<2x1xf32> to vector<2x32xf32>
    %280 = arith.mulf %279, %242 : vector<2x32xf32>
    %281 = arith.addf %276, %280 : vector<2x32xf32>
    %c12 = arith.constant 12 : index
    %c0_54 = arith.constant 0 : index
    %282 = vector.load %arg13[%c12, %c0_54] : memref<16x32xf32, #tpu.memory_space<vmem>>, vector<2x32xf32>
    tpu.vector_store %arg13[%c12, %c0_54], %276 {strides = array<i32>} : memref<16x32xf32, #tpu.memory_space<vmem>>, vector<2x32xf32>,
    %283 = vector.extract_strided_slice %5 {offsets = [14, 0], sizes = [2, 96], strides = [1, 1]} : vector<16x96xf32> to vector<2x96xf32>
    %284 = vector.extract_strided_slice %8 {offsets = [14, 0], sizes = [2, 1], strides = [1, 1]} : vector<16x1xf32> to vector<2x1xf32>
    %cst_55 = arith.constant dense<0.000000e+00> : vector<2x96xf32>
    %285 = tpu.matmul %281, %6, %cst_55 {dimension_numbers = #tpu.dot_dimension_numbers<[1], [0], [0], [1], [0, 0, 1, 1], [], []>} : vector<2x32xf32>, vector<32x96xf32>, vector<2x96xf32> -> vector<2x96xf32>
    %286 = vector.extract_strided_slice %283 {offsets = [0, 0], sizes = [2, 32], strides = [1, 1]} : vector<2x96xf32> to vector<2x32xf32>
    %287 = vector.extract_strided_slice %285 {offsets = [0, 0], sizes = [2, 32], strides = [1, 1]} : vector<2x96xf32> to vector<2x32xf32>
    %288 = arith.addf %286, %287 : vector<2x32xf32>
    %289 = arith.negf %288 : vector<2x32xf32>
    %290 = math.exp %289 : vector<2x32xf32>
    %cst_56 = arith.constant 1.000000e+00 : f32
    %291 = vector.broadcast %cst_56 : f32 to vector<2x32xf32>
    %292 = arith.addf %291, %290 : vector<2x32xf32>
    %293 = arith.divf %291, %292 : vector<2x32xf32>
    %294 = vector.extract_strided_slice %283 {offsets = [0, 32], sizes = [2, 32], strides = [1, 1]} : vector<2x96xf32> to vector<2x32xf32>
    %295 = vector.extract_strided_slice %285 {offsets = [0, 32], sizes = [2, 32], strides = [1, 1]} : vector<2x96xf32> to vector<2x32xf32>
    %296 = arith.addf %294, %295 : vector<2x32xf32>
    %297 = arith.negf %296 : vector<2x32xf32>
    %298 = math.exp %297 : vector<2x32xf32>
    %cst_57 = arith.constant 1.000000e+00 : f32
    %299 = vector.broadcast %cst_57 : f32 to vector<2x32xf32>
    %300 = arith.addf %299, %298 : vector<2x32xf32>
    %301 = arith.divf %299, %300 : vector<2x32xf32>
    %302 = vector.extract_strided_slice %283 {offsets = [0, 64], sizes = [2, 32], strides = [1, 1]} : vector<2x96xf32> to vector<2x32xf32>
    %303 = vector.extract_strided_slice %285 {offsets = [0, 64], sizes = [2, 32], strides = [1, 1]} : vector<2x96xf32> to vector<2x32xf32>
    %304 = vector.broadcast %7 : vector<1x32xf32> to vector<2x32xf32>
    %305 = arith.addf %303, %304 : vector<2x32xf32>
    %306 = arith.mulf %293, %305 : vector<2x32xf32>
    %307 = arith.addf %302, %306 : vector<2x32xf32>
    %308 = math.tanh %307 : vector<2x32xf32>
    %cst_58 = arith.constant 1.000000e+00 : f32
    %309 = vector.broadcast %cst_58 : f32 to vector<2x32xf32>
    %310 = arith.subf %309, %301 : vector<2x32xf32>
    %311 = arith.mulf %310, %308 : vector<2x32xf32>
    %312 = arith.mulf %301, %281 : vector<2x32xf32>
    %313 = arith.addf %311, %312 : vector<2x32xf32>
    %314 = vector.broadcast %284 : vector<2x1xf32> to vector<2x32xf32>
    %315 = arith.mulf %314, %313 : vector<2x32xf32>
    %cst_59 = arith.constant 1.000000e+00 : f32
    %316 = vector.broadcast %cst_59 : f32 to vector<2x1xf32>
    %317 = arith.subf %316, %284 : vector<2x1xf32>
    %318 = vector.broadcast %317 : vector<2x1xf32> to vector<2x32xf32>
    %319 = arith.mulf %318, %281 : vector<2x32xf32>
    %320 = arith.addf %315, %319 : vector<2x32xf32>
    %c14 = arith.constant 14 : index
    %c0_60 = arith.constant 0 : index
    %321 = vector.load %arg13[%c14, %c0_60] : memref<16x32xf32, #tpu.memory_space<vmem>>, vector<2x32xf32>
    tpu.vector_store %arg13[%c14, %c0_60], %315 {strides = array<i32>} : memref<16x32xf32, #tpu.memory_space<vmem>>, vector<2x32xf32>,
    %c0_61 = arith.constant 0 : index
    %c0_62 = arith.constant 0 : index
    %322 = vector.load %arg13[%c0_61, %c0_62] : memref<16x32xf32, #tpu.memory_space<vmem>>, vector<16x32xf32>
    %c0_63 = arith.constant 0 : index
    %c0_64 = arith.constant 0 : index
    %323 = vector.load %arg2[%c0_63, %c0_64] : memref<16x1xf32, #tpu.memory_space<vmem>>, vector<16x1xf32>
    %c0_65 = arith.constant 0 : index
    %c0_66 = arith.constant 0 : index
    %324 = vector.load %arg9[%c0_65, %c0_66] : memref<1x32xf32, #tpu.memory_space<vmem>>, vector<1x32xf32>
    %c0_67 = arith.constant 0 : index
    %c0_68 = arith.constant 0 : index
    %325 = vector.load %arg7[%c0_67, %c0_68] : memref<32x32xf32, #tpu.memory_space<vmem>>, vector<32x32xf32>
    %cst_69 = arith.constant dense<0.000000e+00> : vector<16x32xf32>
    %326 = tpu.matmul %322, %325, %cst_69 {dimension_numbers = #tpu.dot_dimension_numbers<[1], [0], [0], [1], [0, 0, 1, 1], [], []>} : vector<16x32xf32>, vector<32x32xf32>, vector<16x32xf32> -> vector<16x32xf32>
    %c0_70 = arith.constant 0 : index
    %c0_71 = arith.constant 0 : index
    %327 = vector.load %arg8[%c0_70, %c0_71] : memref<32x32xf32, #tpu.memory_space<vmem>>, vector<32x32xf32>
    %cst_72 = arith.constant dense<0.000000e+00> : vector<2x32xf32>
    %328 = tpu.matmul %320, %327, %cst_72 {dimension_numbers = #tpu.dot_dimension_numbers<[1], [0], [0], [1], [0, 0, 1, 1], [], []>} : vector<2x32xf32>, vector<32x32xf32>, vector<2x32xf32> -> vector<2x32xf32>
    %cst_73 = arith.constant 0.000000e+00 : f32
    %329 = vector.broadcast %cst_73 : f32 to vector<2x32xf32>
    %330 = vector.extract_strided_slice %326 {offsets = [0, 0], sizes = [2, 32], strides = [1, 1]} : vector<16x32xf32> to vector<2x32xf32>
    %331 = vector.extract_strided_slice %323 {offsets = [0, 0], sizes = [2, 1], strides = [1, 1]} : vector<16x1xf32> to vector<2x1xf32>
    %332 = vector.extract_strided_slice %322 {offsets = [0, 0], sizes = [2, 32], strides = [1, 1]} : vector<16x32xf32> to vector<2x32xf32>
    %333 = vector.broadcast %331 : vector<2x1xf32> to vector<2x32xf32>
    %334 = arith.mulf %333, %328 : vector<2x32xf32>
    %335 = arith.addf %330, %334 : vector<2x32xf32>
    %336 = arith.negf %335 : vector<2x32xf32>
    %337 = math.exp %336 : vector<2x32xf32>
    %cst_74 = arith.constant 1.000000e+00 : f32
    %338 = vector.broadcast %cst_74 : f32 to vector<2x32xf32>
    %339 = arith.addf %338, %337 : vector<2x32xf32>
    %340 = arith.divf %338, %339 : vector<2x32xf32>
    %341 = vector.broadcast %324 : vector<1x32xf32> to vector<2x32xf32>
    %342 = arith.mulf %340, %341 : vector<2x32xf32>
    %cst_75 = arith.constant dense<0.000000e+00> : vector<2xf32>
    %343 = vector.multi_reduction <add>, %342, %cst_75 [1] : vector<2x32xf32> to vector<2xf32>
    %344 = vector.shape_cast %343 : vector<2xf32> to vector<2x1xf32>
    %345 = vector.broadcast %344 : vector<2x1xf32> to vector<2x32xf32>
    %346 = arith.mulf %345, %332 : vector<2x32xf32>
    %347 = arith.addf %329, %346 : vector<2x32xf32>
    %348 = vector.extract_strided_slice %326 {offsets = [2, 0], sizes = [2, 32], strides = [1, 1]} : vector<16x32xf32> to vector<2x32xf32>
    %349 = vector.extract_strided_slice %323 {offsets = [2, 0], sizes = [2, 1], strides = [1, 1]} : vector<16x1xf32> to vector<2x1xf32>
    %350 = vector.extract_strided_slice %322 {offsets = [2, 0], sizes = [2, 32], strides = [1, 1]} : vector<16x32xf32> to vector<2x32xf32>
    %351 = vector.broadcast %349 : vector<2x1xf32> to vector<2x32xf32>
    %352 = arith.mulf %351, %328 : vector<2x32xf32>
    %353 = arith.addf %348, %352 : vector<2x32xf32>
    %354 = arith.negf %353 : vector<2x32xf32>
    %355 = math.exp %354 : vector<2x32xf32>
    %cst_76 = arith.constant 1.000000e+00 : f32
    %356 = vector.broadcast %cst_76 : f32 to vector<2x32xf32>
    %357 = arith.addf %356, %355 : vector<2x32xf32>
    %358 = arith.divf %356, %357 : vector<2x32xf32>
    %359 = vector.broadcast %324 : vector<1x32xf32> to vector<2x32xf32>
    %360 = arith.mulf %358, %359 : vector<2x32xf32>
    %cst_77 = arith.constant dense<0.000000e+00> : vector<2xf32>
    %361 = vector.multi_reduction <add>, %360, %cst_77 [1] : vector<2x32xf32> to vector<2xf32>
    %362 = vector.shape_cast %361 : vector<2xf32> to vector<2x1xf32>
    %363 = vector.broadcast %362 : vector<2x1xf32> to vector<2x32xf32>
    %364 = arith.mulf %363, %350 : vector<2x32xf32>
    %365 = arith.addf %347, %364 : vector<2x32xf32>
    %366 = vector.extract_strided_slice %326 {offsets = [4, 0], sizes = [2, 32], strides = [1, 1]} : vector<16x32xf32> to vector<2x32xf32>
    %367 = vector.extract_strided_slice %323 {offsets = [4, 0], sizes = [2, 1], strides = [1, 1]} : vector<16x1xf32> to vector<2x1xf32>
    %368 = vector.extract_strided_slice %322 {offsets = [4, 0], sizes = [2, 32], strides = [1, 1]} : vector<16x32xf32> to vector<2x32xf32>
    %369 = vector.broadcast %367 : vector<2x1xf32> to vector<2x32xf32>
    %370 = arith.mulf %369, %328 : vector<2x32xf32>
    %371 = arith.addf %366, %370 : vector<2x32xf32>
    %372 = arith.negf %371 : vector<2x32xf32>
    %373 = math.exp %372 : vector<2x32xf32>
    %cst_78 = arith.constant 1.000000e+00 : f32
    %374 = vector.broadcast %cst_78 : f32 to vector<2x32xf32>
    %375 = arith.addf %374, %373 : vector<2x32xf32>
    %376 = arith.divf %374, %375 : vector<2x32xf32>
    %377 = vector.broadcast %324 : vector<1x32xf32> to vector<2x32xf32>
    %378 = arith.mulf %376, %377 : vector<2x32xf32>
    %cst_79 = arith.constant dense<0.000000e+00> : vector<2xf32>
    %379 = vector.multi_reduction <add>, %378, %cst_79 [1] : vector<2x32xf32> to vector<2xf32>
    %380 = vector.shape_cast %379 : vector<2xf32> to vector<2x1xf32>
    %381 = vector.broadcast %380 : vector<2x1xf32> to vector<2x32xf32>
    %382 = arith.mulf %381, %368 : vector<2x32xf32>
    %383 = arith.addf %365, %382 : vector<2x32xf32>
    %384 = vector.extract_strided_slice %326 {offsets = [6, 0], sizes = [2, 32], strides = [1, 1]} : vector<16x32xf32> to vector<2x32xf32>
    %385 = vector.extract_strided_slice %323 {offsets = [6, 0], sizes = [2, 1], strides = [1, 1]} : vector<16x1xf32> to vector<2x1xf32>
    %386 = vector.extract_strided_slice %322 {offsets = [6, 0], sizes = [2, 32], strides = [1, 1]} : vector<16x32xf32> to vector<2x32xf32>
    %387 = vector.broadcast %385 : vector<2x1xf32> to vector<2x32xf32>
    %388 = arith.mulf %387, %328 : vector<2x32xf32>
    %389 = arith.addf %384, %388 : vector<2x32xf32>
    %390 = arith.negf %389 : vector<2x32xf32>
    %391 = math.exp %390 : vector<2x32xf32>
    %cst_80 = arith.constant 1.000000e+00 : f32
    %392 = vector.broadcast %cst_80 : f32 to vector<2x32xf32>
    %393 = arith.addf %392, %391 : vector<2x32xf32>
    %394 = arith.divf %392, %393 : vector<2x32xf32>
    %395 = vector.broadcast %324 : vector<1x32xf32> to vector<2x32xf32>
    %396 = arith.mulf %394, %395 : vector<2x32xf32>
    %cst_81 = arith.constant dense<0.000000e+00> : vector<2xf32>
    %397 = vector.multi_reduction <add>, %396, %cst_81 [1] : vector<2x32xf32> to vector<2xf32>
    %398 = vector.shape_cast %397 : vector<2xf32> to vector<2x1xf32>
    %399 = vector.broadcast %398 : vector<2x1xf32> to vector<2x32xf32>
    %400 = arith.mulf %399, %386 : vector<2x32xf32>
    %401 = arith.addf %383, %400 : vector<2x32xf32>
    %402 = vector.extract_strided_slice %326 {offsets = [8, 0], sizes = [2, 32], strides = [1, 1]} : vector<16x32xf32> to vector<2x32xf32>
    %403 = vector.extract_strided_slice %323 {offsets = [8, 0], sizes = [2, 1], strides = [1, 1]} : vector<16x1xf32> to vector<2x1xf32>
    %404 = vector.extract_strided_slice %322 {offsets = [8, 0], sizes = [2, 32], strides = [1, 1]} : vector<16x32xf32> to vector<2x32xf32>
    %405 = vector.broadcast %403 : vector<2x1xf32> to vector<2x32xf32>
    %406 = arith.mulf %405, %328 : vector<2x32xf32>
    %407 = arith.addf %402, %406 : vector<2x32xf32>
    %408 = arith.negf %407 : vector<2x32xf32>
    %409 = math.exp %408 : vector<2x32xf32>
    %cst_82 = arith.constant 1.000000e+00 : f32
    %410 = vector.broadcast %cst_82 : f32 to vector<2x32xf32>
    %411 = arith.addf %410, %409 : vector<2x32xf32>
    %412 = arith.divf %410, %411 : vector<2x32xf32>
    %413 = vector.broadcast %324 : vector<1x32xf32> to vector<2x32xf32>
    %414 = arith.mulf %412, %413 : vector<2x32xf32>
    %cst_83 = arith.constant dense<0.000000e+00> : vector<2xf32>
    %415 = vector.multi_reduction <add>, %414, %cst_83 [1] : vector<2x32xf32> to vector<2xf32>
    %416 = vector.shape_cast %415 : vector<2xf32> to vector<2x1xf32>
    %417 = vector.broadcast %416 : vector<2x1xf32> to vector<2x32xf32>
    %418 = arith.mulf %417, %404 : vector<2x32xf32>
    %419 = arith.addf %401, %418 : vector<2x32xf32>
    %420 = vector.extract_strided_slice %326 {offsets = [10, 0], sizes = [2, 32], strides = [1, 1]} : vector<16x32xf32> to vector<2x32xf32>
    %421 = vector.extract_strided_slice %323 {offsets = [10, 0], sizes = [2, 1], strides = [1, 1]} : vector<16x1xf32> to vector<2x1xf32>
    %422 = vector.extract_strided_slice %322 {offsets = [10, 0], sizes = [2, 32], strides = [1, 1]} : vector<16x32xf32> to vector<2x32xf32>
    %423 = vector.broadcast %421 : vector<2x1xf32> to vector<2x32xf32>
    %424 = arith.mulf %423, %328 : vector<2x32xf32>
    %425 = arith.addf %420, %424 : vector<2x32xf32>
    %426 = arith.negf %425 : vector<2x32xf32>
    %427 = math.exp %426 : vector<2x32xf32>
    %cst_84 = arith.constant 1.000000e+00 : f32
    %428 = vector.broadcast %cst_84 : f32 to vector<2x32xf32>
    %429 = arith.addf %428, %427 : vector<2x32xf32>
    %430 = arith.divf %428, %429 : vector<2x32xf32>
    %431 = vector.broadcast %324 : vector<1x32xf32> to vector<2x32xf32>
    %432 = arith.mulf %430, %431 : vector<2x32xf32>
    %cst_85 = arith.constant dense<0.000000e+00> : vector<2xf32>
    %433 = vector.multi_reduction <add>, %432, %cst_85 [1] : vector<2x32xf32> to vector<2xf32>
    %434 = vector.shape_cast %433 : vector<2xf32> to vector<2x1xf32>
    %435 = vector.broadcast %434 : vector<2x1xf32> to vector<2x32xf32>
    %436 = arith.mulf %435, %422 : vector<2x32xf32>
    %437 = arith.addf %419, %436 : vector<2x32xf32>
    %438 = vector.extract_strided_slice %326 {offsets = [12, 0], sizes = [2, 32], strides = [1, 1]} : vector<16x32xf32> to vector<2x32xf32>
    %439 = vector.extract_strided_slice %323 {offsets = [12, 0], sizes = [2, 1], strides = [1, 1]} : vector<16x1xf32> to vector<2x1xf32>
    %440 = vector.extract_strided_slice %322 {offsets = [12, 0], sizes = [2, 32], strides = [1, 1]} : vector<16x32xf32> to vector<2x32xf32>
    %441 = vector.broadcast %439 : vector<2x1xf32> to vector<2x32xf32>
    %442 = arith.mulf %441, %328 : vector<2x32xf32>
    %443 = arith.addf %438, %442 : vector<2x32xf32>
    %444 = arith.negf %443 : vector<2x32xf32>
    %445 = math.exp %444 : vector<2x32xf32>
    %cst_86 = arith.constant 1.000000e+00 : f32
    %446 = vector.broadcast %cst_86 : f32 to vector<2x32xf32>
    %447 = arith.addf %446, %445 : vector<2x32xf32>
    %448 = arith.divf %446, %447 : vector<2x32xf32>
    %449 = vector.broadcast %324 : vector<1x32xf32> to vector<2x32xf32>
    %450 = arith.mulf %448, %449 : vector<2x32xf32>
    %cst_87 = arith.constant dense<0.000000e+00> : vector<2xf32>
    %451 = vector.multi_reduction <add>, %450, %cst_87 [1] : vector<2x32xf32> to vector<2xf32>
    %452 = vector.shape_cast %451 : vector<2xf32> to vector<2x1xf32>
    %453 = vector.broadcast %452 : vector<2x1xf32> to vector<2x32xf32>
    %454 = arith.mulf %453, %440 : vector<2x32xf32>
    %455 = arith.addf %437, %454 : vector<2x32xf32>
    %456 = vector.extract_strided_slice %326 {offsets = [14, 0], sizes = [2, 32], strides = [1, 1]} : vector<16x32xf32> to vector<2x32xf32>
    %457 = vector.extract_strided_slice %323 {offsets = [14, 0], sizes = [2, 1], strides = [1, 1]} : vector<16x1xf32> to vector<2x1xf32>
    %458 = vector.extract_strided_slice %322 {offsets = [14, 0], sizes = [2, 32], strides = [1, 1]} : vector<16x32xf32> to vector<2x32xf32>
    %459 = vector.broadcast %457 : vector<2x1xf32> to vector<2x32xf32>
    %460 = arith.mulf %459, %328 : vector<2x32xf32>
    %461 = arith.addf %456, %460 : vector<2x32xf32>
    %462 = arith.negf %461 : vector<2x32xf32>
    %463 = math.exp %462 : vector<2x32xf32>
    %cst_88 = arith.constant 1.000000e+00 : f32
    %464 = vector.broadcast %cst_88 : f32 to vector<2x32xf32>
    %465 = arith.addf %464, %463 : vector<2x32xf32>
    %466 = arith.divf %464, %465 : vector<2x32xf32>
    %467 = vector.broadcast %324 : vector<1x32xf32> to vector<2x32xf32>
    %468 = arith.mulf %466, %467 : vector<2x32xf32>
    %cst_89 = arith.constant dense<0.000000e+00> : vector<2xf32>
    %469 = vector.multi_reduction <add>, %468, %cst_89 [1] : vector<2x32xf32> to vector<2xf32>
    %470 = vector.shape_cast %469 : vector<2xf32> to vector<2x1xf32>
    %471 = vector.broadcast %470 : vector<2x1xf32> to vector<2x32xf32>
    %472 = arith.mulf %471, %458 : vector<2x32xf32>
    %473 = arith.addf %455, %472 : vector<2x32xf32>
    %c0_90 = arith.constant 0 : index
    %c0_91 = arith.constant 0 : index
    %474 = vector.load %arg10[%c0_90, %c0_91] : memref<32x32xf32, #tpu.memory_space<vmem>>, vector<32x32xf32>
    %cst_92 = arith.constant dense<0.000000e+00> : vector<2x32xf32>
    %475 = tpu.matmul %473, %474, %cst_92 {dimension_numbers = #tpu.dot_dimension_numbers<[1], [0], [0], [1], [0, 0, 1, 1], [], []>} : vector<2x32xf32>, vector<32x32xf32>, vector<2x32xf32> -> vector<2x32xf32>
    %c0_93 = arith.constant 0 : index
    %c0_94 = arith.constant 0 : index
    %476 = vector.load %arg11[%c0_93, %c0_94] : memref<32x32xf32, #tpu.memory_space<vmem>>, vector<32x32xf32>
    %cst_95 = arith.constant dense<0.000000e+00> : vector<2x32xf32>
    %477 = tpu.matmul %320, %476, %cst_95 {dimension_numbers = #tpu.dot_dimension_numbers<[1], [0], [0], [1], [0, 0, 1, 1], [], []>} : vector<2x32xf32>, vector<32x32xf32>, vector<2x32xf32> -> vector<2x32xf32>
    %478 = arith.addf %475, %477 : vector<2x32xf32>
    %c0_96 = arith.constant 0 : index
    %c0_97 = arith.constant 0 : index
    %479 = vector.load %arg12[%c0_96, %c0_97] : memref<2x32xf32, #tpu.memory_space<vmem>>, vector<2x32xf32>
    tpu.vector_store %arg12[%c0_96, %c0_97], %478 {strides = array<i32>} : memref<2x32xf32, #tpu.memory_space<vmem>>, vector<2x32xf32>,
    return
  }
}

</mosaic_0001>

<llo_original>
// kernel: narm_forward.3
$region0: #{narm_forward.3}
  #allocation0 [shape = 'u32[]', space=smem, size = 0x4, offset = 0x4, fixed_abs, tag = 'smem constant byte address 0x4 - core index']
  #allocation1 [shape = 'u32[144,128]{1,0:T(1,128)}', space=vmem, size = 0x12000, scoped, tag = 'internal scratch']
  %s0 = inlined_call_operand.vmem [shape: f32[2,32], index: 0, kind: input, shape index: {}]
  %s1 = inlined_call_operand.vmem [shape: f32[32,128], index: 1, kind: input, shape index: {}]
  %s2 = inlined_call_operand.hbm [shape: f32[2,128], index: 2, kind: output, shape index: {}]
  %s3 = sld [smem:[#allocation0]]
  $region18: #{narm_forward.3} parent=0
    _
  %s5 = ssub.s32 1, %s3
  %s6 = scalar_select 0, %s5, %s3
  $region1: #{narm_forward.3} parent=0
    #allocation2 [shape = 'u8[1024]{0}', space=vmem, size = 0x400, scoped, tag = 'output window, operand 0, single buffered']
    #allocation3 [shape = 's32[1]{0}', space=sflag, size = 0x4, scoped, tag = 'scoped memory for narm_forward.3']
    %7 = vsyncpa [#allocation3], 0
    // Predicated region
    $region2: #{narm_forward.3} parent=1 // pred_check
      _
    $region3: #{narm_forward.3} parent=1 // pred_check_branch
      %9 = sbr.rel (0) target = $region5
    $region4: #{narm_forward.3} parent=1 // pred_region
      _
    $region5: #{narm_forward.3} parent=1 // pred_fallthru
      _
    // Predicated region
    $region6: #{narm_forward.3} parent=1 // pred_check
      _
    $region7: #{narm_forward.3} parent=1 // pred_check_branch
      %11 = sbr.rel (0) target = $region9
    $region8: #{narm_forward.3} parent=1 // pred_region
      _
    $region9: #{narm_forward.3} parent=1 // pred_fallthru
      _
    %v12 = vld [vmem:[%s0] sm:$0x3]
    %v13 = vld [vmem:[%s1] sm:$0xff]
    %v14 = vld [vmem:[%s1 + $0x8] sm:$0xff]
    %v15 = vld [vmem:[%s1 + $0x10] sm:$0xff]
    %v16 = vld [vmem:[%s1 + $0x18] sm:$0xff]
    %vm17 = vcmask 261120
    %v19 = vsel %vm17, %v12, 0
    %21 = vmatprep.subr.mxu0 0.0
    %22 = vmatpush1.msra.mxu0 %v13
    %23 = vmatprep.subr.mxu0 0.0
    %24 = vmatpush1.msra.mxu0 %v14
    %25 = vmatprep.subr.mxu0 0.0
    %26 = vmatpush1.msra.mxu0 %v15
    %27 = vmatprep.subr.mxu0 0.0
    %28 = vmatpush1.msra.mxu0 %v16
    %29 = vmatprep.subr.mxu0 0.0
    %30 = vmatpush1.msra.mxu0 0.0
    %31 = vmatprep.subr.mxu0 0.0
    %32 = vmatpush1.msra.mxu0 0.0
    %33 = vmatprep.subr.mxu0 0.0
    %34 = vmatpush1.msra.mxu0 0.0
    %35 = vmatprep.subr.mxu0 0.0
    %36 = vmatpush1.msra.mxu0 0.0
    %37 = vmatprep.subr.mxu0 0.0
    %38 = vmatpush1.msra.mxu0 0.0
    %39 = vmatprep.subr.mxu0 0.0
    %40 = vmatpush1.msra.mxu0 0.0
    %41 = vmatprep.subr.mxu0 0.0
    %42 = vmatpush1.msra.mxu0 0.0
    %43 = vmatprep.subr.mxu0 0.0
    %44 = vmatpush1.msra.mxu0 0.0
    %45 = vmatprep.subr.mxu0 0.0
    %46 = vmatpush1.msra.mxu0 0.0
    %47 = vmatprep.subr.mxu0 0.0
    %48 = vmatpush1.msra.mxu0 0.0
    %49 = vmatprep.subr.mxu0 0.0
    %50 = vmatpush1.msra.mxu0 0.0
    %51 = vmatprep.subr.mxu0 0.0
    %52 = vmatpush1.msra.mxu0 0.0
    %53 = vmatprep.subr.mxu0 0.0
    %54 = vmatpush1.msra.mxu0 0.0
    %55 = vmatprep.subr.mxu0 0.0
    %56 = vmatpush1.msra.mxu0 0.0
    %57 = vmatprep.subr.mxu0 0.0
    %58 = vmatpush1.msra.mxu0 0.0
    %59 = vmatprep.subr.mxu0 0.0
    %60 = vmatpush1.msra.mxu0 0.0
    %61 = vmatprep.subr.mxu0 0.0
    %62 = vmatpush1.msra.mxu0 0.0
    %63 = vmatprep.subr.mxu0 0.0
    %64 = vmatpush1.msra.mxu0 0.0
    %65 = vmatprep.subr.mxu0 0.0
    %66 = vmatpush1.msra.mxu0 0.0
    %67 = vmatprep.subr.mxu0 0.0
    %68 = vmatpush1.msra.mxu0 0.0
    %69 = vmatprep.subr.mxu0 0.0
    %70 = vmatpush1.msra.mxu0 0.0
    %71 = vmatprep.subr.mxu0 0.0
    %72 = vmatpush1.msra.mxu0 0.0
    %73 = vmatprep.subr.mxu0 0.0
    %74 = vmatpush1.msra.mxu0 0.0
    %75 = vmatprep.subr.mxu0 0.0
    %76 = vmatpush1.msra.mxu0 0.0
    %77 = vmatprep.subr.mxu0 0.0
    %78 = vmatpush1.msra.mxu0 0.0
    %79 = vmatprep.subr.mxu0 0.0
    %80 = vmatpush1.msra.mxu0 0.0
    %81 = vmatprep.subr.mxu0 0.0
    %82 = vmatpush1.msra.mxu0 0.0
    %83 = vmatprep.subr.mxu0 0.0
    %84 = vmatpush1.msra.mxu0 0.0
    %85 = vmatprep.mubr.f32.mxu0 0.0
    %86 = vmatmul.mubr.f32.gmra.mrb[0].mxu0 %v19
    %v87 = vpop.f32.mrb[0].mxu0
    %v88 = vadd.f32 0.0, %v87
    %v89 = vpop.f32.mrb[0].mxu0
    %90 = vdwg.mxu0
    %91 = vst [vmem:[#allocation2] sm:$0x3] %v88
    // Predicated region
    $region10: #{narm_forward.3} parent=1 // pred_check
      _
    $region11: #{narm_forward.3} parent=1 // pred_check_branch
      %93 = sbr.rel (0) target = $region13
    $region12: #{narm_forward.3} parent=1 // pred_region
      %s95 = ssub.s32 32, 32
      %96 = vsyncadd [#allocation3], %s95
      %s98 = sshll.u32 [#allocation2], 4
      %s99 = int_to_ptr.vmem [resolvable:$true] %s98
      %101 = dma.vmem_to_hbm [thread:$0]  %s99, 32, %s2, [#allocation3]
    $region13: #{narm_forward.3} parent=1 // pred_fallthru
      _
    // Predicated region
    $region14: #{narm_forward.3} parent=1 // pred_check
      _
    $region15: #{narm_forward.3} parent=1 // pred_check_branch
      %103 = sbr.rel (0) target = $region17
    $region16: #{narm_forward.3} parent=1 // pred_region
      %104 = dma.done [#allocation3], 32
    $region17: #{narm_forward.3} parent=1 // pred_fallthru
      _
    %105 = vsyncpa [#allocation3], 1

// kernel: narm_forward.2
$region0: #{narm_forward.2}
  #allocation0 [shape = 'u32[]', space=smem, size = 0x4, offset = 0x4, fixed_abs, tag = 'smem constant byte address 0x4 - core index']
  #allocation1 [shape = 'u32[144,128]{1,0:T(1,128)}', space=vmem, size = 0x12000, scoped, tag = 'internal scratch']
  #allocation2 [shape = 'f32[16,32]{1,0:T(8,128)}', space=vmem, size = 0x2000, scoped, tag = 'scratch operand']
  %s0 = inlined_call_operand.vmem [shape: f32[16,32], index: 0, kind: input, shape index: {}]
  %s1 = inlined_call_operand.vmem [shape: f32[16,1], index: 1, kind: input, shape index: {}]
  %s2 = inlined_call_operand.vmem [shape: f32[16,1], index: 2, kind: input, shape index: {}]
  %s3 = inlined_call_operand.vmem [shape: f32[32,96], index: 3, kind: input, shape index: {}]
  %s4 = inlined_call_operand.vmem [shape: f32[32,96], index: 4, kind: input, shape index: {}]
  %s5 = inlined_call_operand.vmem [shape: f32[1,96], index: 5, kind: input, shape index: {}]
  %s6 = inlined_call_operand.vmem [shape: f32[1,32], index: 6, kind: input, shape index: {}]
  %s7 = inlined_call_operand.vmem [shape: f32[32,32], index: 7, kind: input, shape index: {}]
  %s8 = inlined_call_operand.vmem [shape: f32[32,32], index: 8, kind: input, shape index: {}]
  %s9 = inlined_call_operand.vmem [shape: f32[1,32], index: 9, kind: input, shape index: {}]
  %s10 = inlined_call_operand.vmem [shape: f32[32,32], index: 10, kind: input, shape index: {}]
  %s11 = inlined_call_operand.vmem [shape: f32[32,32], index: 11, kind: input, shape index: {}]
  %s12 = inlined_call_operand.vmem [shape: f32[2,32], index: 12, kind: output, shape index: {}]
  %s13 = sld [smem:[#allocation0]]
  $region58: #{narm_forward.2} parent=0
    _
  %s15 = ssub.s32 1, %s13
  %s16 = scalar_select 0, %s15, %s13
  // Predicated region
  $region2: #{narm_forward.2} parent=0 // pred_check
    _
  $region3: #{narm_forward.2} parent=0 // pred_check_branch
    %18 = sbr.rel (0) target = $region5
  $region4: #{narm_forward.2} parent=0 // pred_region
    _
  $region5: #{narm_forward.2} parent=0 // pred_fallthru
    _
  // Predicated region
  $region6: #{narm_forward.2} parent=0 // pred_check
    _
  $region7: #{narm_forward.2} parent=0 // pred_check_branch
    %20 = sbr.rel (0) target = $region9
  $region8: #{narm_forward.2} parent=0 // pred_region
    _
  $region9: #{narm_forward.2} parent=0 // pred_fallthru
    _
  // Predicated region
  $region10: #{narm_forward.2} parent=0 // pred_check
    _
  $region11: #{narm_forward.2} parent=0 // pred_check_branch
    %22 = sbr.rel (0) target = $region13
  $region12: #{narm_forward.2} parent=0 // pred_region
    _
  $region13: #{narm_forward.2} parent=0 // pred_fallthru
    _
  // Predicated region
  $region14: #{narm_forward.2} parent=0 // pred_check
    _
  $region15: #{narm_forward.2} parent=0 // pred_check_branch
    %24 = sbr.rel (0) target = $region17
  $region16: #{narm_forward.2} parent=0 // pred_region
    _
  $region17: #{narm_forward.2} parent=0 // pred_fallthru
    _
  // Predicated region
  $region18: #{narm_forward.2} parent=0 // pred_check
    _
  $region19: #{narm_forward.2} parent=0 // pred_check_branch
    %26 = sbr.rel (0) target = $region21
  $region20: #{narm_forward.2} parent=0 // pred_region
    _
  $region21: #{narm_forward.2} parent=0 // pred_fallthru
    _
  // Predicated region
  $region22: #{narm_forward.2} parent=0 // pred_check
    _
  $region23: #{narm_forward.2} parent=0 // pred_check_branch
    %28 = sbr.rel (0) target = $region25
  $region24: #{narm_forward.2} parent=0 // pred_region
    _
  $region25: #{narm_forward.2} parent=0 // pred_fallthru
    _
  // Predicated region
  $region26: #{narm_forward.2} parent=0 // pred_check
    _
  $region27: #{narm_forward.2} parent=0 // pred_check_branch
    %30 = sbr.rel (0) target = $region29
  $region28: #{narm_forward.2} parent=0 // pred_region
    _
  $region29: #{narm_forward.2} parent=0 // pred_fallthru
    _
  // Predicated region
  $region30: #{narm_forward.2} parent=0 // pred_check
    _
  $region31: #{narm_forward.2} parent=0 // pred_check_branch
    %32 = sbr.rel (0) target = $region33
  $region32: #{narm_forward.2} parent=0 // pred_region
    _
  $region33: #{narm_forward.2} parent=0 // pred_fallthru
    _
  // Predicated region
  $region34: #{narm_forward.2} parent=0 // pred_check
    _
  $region35: #{narm_forward.2} parent=0 // pred_check_branch
    %34 = sbr.rel (0) target = $region37
  $region36: #{narm_forward.2} parent=0 // pred_region
    _
  $region37: #{narm_forward.2} parent=0 // pred_fallthru
    _
  // Predicated region
  $region38: #{narm_forward.2} parent=0 // pred_check
    _
  $region39: #{narm_forward.2} parent=0 // pred_check_branch
    %36 = sbr.rel (0) target = $region41
  $region40: #{narm_forward.2} parent=0 // pred_region
    _
  $region41: #{narm_forward.2} parent=0 // pred_fallthru
    _
  // Predicated region
  $region42: #{narm_forward.2} parent=0 // pred_check
    _
  $region43: #{narm_forward.2} parent=0 // pred_check_branch
    %38 = sbr.rel (0) target = $region45
  $region44: #{narm_forward.2} parent=0 // pred_region
    _
  $region45: #{narm_forward.2} parent=0 // pred_fallthru
    _
  // Predicated region
  $region46: #{narm_forward.2} parent=0 // pred_check
    _
  $region47: #{narm_forward.2} parent=0 // pred_check_branch
    %40 = sbr.rel (0) target = $region49
  $region48: #{narm_forward.2} parent=0 // pred_region
    _
  $region49: #{narm_forward.2} parent=0 // pred_fallthru
    _
  %v41 = vld [vmem:[%s0] sm:$0xff]
  %v42 = vld [vmem:[%s0 + $0x8] sm:$0xff]
  %v43 = vld [vmem:[%s3] sm:$0xff]
  %v44 = vld [vmem:[%s3 + $0x8] sm:$0xff]
  %v45 = vld [vmem:[%s3 + $0x10] sm:$0xff]
  %v46 = vld [vmem:[%s3 + $0x18] sm:$0xff]
  %v47 = vld [vmem:[%s5] sm:$0x1]
  %v49 = vlaneseq
  %v50 = vshrl.u32 %v49, 7
  %v51 = vsub.s32 0, %v50
  %v52 = vrot.slane %v47, %v51
  %vm54 = vcmask 261120
  %v56 = vsel %vm54, %v41, 0
  %v59 = vsel %vm54, %v42, 0
  %61 = vmatprep.subr.mxu0 0.0
  %62 = vmatpush1.msra.mxu0 %v43
  %63 = vmatprep.subr.mxu0 0.0
  %64 = vmatpush1.msra.mxu0 %v44
  %65 = vmatprep.subr.mxu0 0.0
  %66 = vmatpush1.msra.mxu0 %v45
  %67 = vmatprep.subr.mxu0 0.0
  %68 = vmatpush1.msra.mxu0 %v46
  %69 = vmatprep.subr.mxu0 0.0
  %70 = vmatpush1.msra.mxu0 0.0
  %71 = vmatprep.subr.mxu0 0.0
  %72 = vmatpush1.msra.mxu0 0.0
  %73 = vmatprep.subr.mxu0 0.0
  %74 = vmatpush1.msra.mxu0 0.0
  %75 = vmatprep.subr.mxu0 0.0
  %76 = vmatpush1.msra.mxu0 0.0
  %77 = vmatprep.subr.mxu0 0.0
  %78 = vmatpush1.msra.mxu0 0.0
  %79 = vmatprep.subr.mxu0 0.0
  %80 = vmatpush1.msra.mxu0 0.0
  %81 = vmatprep.subr.mxu0 0.0
  %82 = vmatpush1.msra.mxu0 0.0
  %83 = vmatprep.subr.mxu0 0.0
  %84 = vmatpush1.msra.mxu0 0.0
  %85 = vmatprep.subr.mxu0 0.0
  %86 = vmatpush1.msra.mxu0 0.0
  %87 = vmatprep.subr.mxu0 0.0
  %88 = vmatpush1.msra.mxu0 0.0
  %89 = vmatprep.subr.mxu0 0.0
  %90 = vmatpush1.msra.mxu0 0.0
  %91 = vmatprep.subr.mxu0 0.0
  %92 = vmatpush1.msra.mxu0 0.0
  %93 = vmatprep.subr.mxu0 0.0
  %94 = vmatpush1.msra.mxu0 0.0
  %95 = vmatprep.subr.mxu0 0.0
  %96 = vmatpush1.msra.mxu0 0.0
  %97 = vmatprep.subr.mxu0 0.0
  %98 = vmatpush1.msra.mxu0 0.0
  %99 = vmatprep.subr.mxu0 0.0
  %100 = vmatpush1.msra.mxu0 0.0
  %101 = vmatprep.subr.mxu0 0.0
  %102 = vmatpush1.msra.mxu0 0.0
  %103 = vmatprep.subr.mxu0 0.0
  %104 = vmatpush1.msra.mxu0 0.0
  %105 = vmatprep.subr.mxu0 0.0
  %106 = vmatpush1.msra.mxu0 0.0
  %107 = vmatprep.subr.mxu0 0.0
  %108 = vmatpush1.msra.mxu0 0.0
  %109 = vmatprep.subr.mxu0 0.0
  %110 = vmatpush1.msra.mxu0 0.0
  %111 = vmatprep.subr.mxu0 0.0
  %112 = vmatpush1.msra.mxu0 0.0
  %113 = vmatprep.subr.mxu0 0.0
  %114 = vmatpush1.msra.mxu0 0.0
  %115 = vmatprep.subr.mxu0 0.0
  %116 = vmatpush1.msra.mxu0 0.0
  %117 = vmatprep.subr.mxu0 0.0
  %118 = vmatpush1.msra.mxu0 0.0
  %119 = vmatprep.subr.mxu0 0.0
  %120 = vmatpush1.msra.mxu0 0.0
  %121 = vmatprep.subr.mxu0 0.0
  %122 = vmatpush1.msra.mxu0 0.0
  %123 = vmatprep.subr.mxu0 0.0
  %124 = vmatpush1.msra.mxu0 0.0
  %125 = vmatprep.mubr.f32.mxu0 0.0
  %126 = vmatmul.mubr.f32.gmra.mrb[0].mxu0 %v56
  %v127 = vpop.f32.mrb[0].mxu0
  %v128 = vadd.f32 %v52, %v127
  %v129 = vpop.f32.mrb[0].mxu0
  %130 = vmatprep.mubr.f32.mxu0 0.0
  %131 = vmatmul.mubr.f32.gmra.mrb[0].mxu0 %v59
  %v132 = vpop.f32.mrb[0].mxu0
  %v133 = vadd.f32 %v52, %v132
  %v134 = vpop.f32.mrb[0].mxu0
  %135 = vdwg.mxu0
  %v136 = vld [vmem:[%s4] sm:$0xff]
  %v137 = vld [vmem:[%s4 + $0x8] sm:$0xff]
  %v138 = vld [vmem:[%s4 + $0x10] sm:$0xff]
  %v139 = vld [vmem:[%s4 + $0x18] sm:$0xff]
  %v140 = vld [vmem:[%s6] sm:$0x1]
  %v141 = vld [vmem:[%s1] sm:$0xff]
  %v142 = vld [vmem:[%s1 + $0x8] sm:$0xff]
  %v144 = vsel %vm54, 0.0, 0
  %146 = vmatprep.subr.mxu0 0.0
  %147 = vmatpush1.msra.mxu0 %v136
  %148 = vmatprep.subr.mxu0 0.0
  %149 = vmatpush1.msra.mxu0 %v137
  %150 = vmatprep.subr.mxu0 0.0
  %151 = vmatpush1.msra.mxu0 %v138
  %152 = vmatprep.subr.mxu0 0.0
  %153 = vmatpush1.msra.mxu0 %v139
  %154 = vmatprep.subr.mxu0 0.0
  %155 = vmatpush1.msra.mxu0 0.0
  %156 = vmatprep.subr.mxu0 0.0
  %157 = vmatpush1.msra.mxu0 0.0
  %158 = vmatprep.subr.mxu0 0.0
  %159 = vmatpush1.msra.mxu0 0.0
  %160 = vmatprep.subr.mxu0 0.0
  %161 = vmatpush1.msra.mxu0 0.0
  %162 = vmatprep.subr.mxu0 0.0
  %163 = vmatpush1.msra.mxu0 0.0
  %164 = vmatprep.subr.mxu0 0.0
  %165 = vmatpush1.msra.mxu0 0.0
  %166 = vmatprep.subr.mxu0 0.0
  %167 = vmatpush1.msra.mxu0 0.0
  %168 = vmatprep.subr.mxu0 0.0
  %169 = vmatpush1.msra.mxu0 0.0
  %170 = vmatprep.subr.mxu0 0.0
  %171 = vmatpush1.msra.mxu0 0.0
  %172 = vmatprep.subr.mxu0 0.0
  %173 = vmatpush1.msra.mxu0 0.0
  %174 = vmatprep.subr.mxu0 0.0
  %175 = vmatpush1.msra.mxu0 0.0
  %176 = vmatprep.subr.mxu0 0.0
  %177 = vmatpush1.msra.mxu0 0.0
  %178 = vmatprep.subr.mxu0 0.0
  %179 = vmatpush1.msra.mxu0 0.0
  %180 = vmatprep.subr.mxu0 0.0
  %181 = vmatpush1.msra.mxu0 0.0
  %182 = vmatprep.subr.mxu0 0.0
  %183 = vmatpush1.msra.mxu0 0.0
  %184 = vmatprep.subr.mxu0 0.0
  %185 = vmatpush1.msra.mxu0 0.0
  %186 = vmatprep.subr.mxu0 0.0
  %187 = vmatpush1.msra.mxu0 0.0
  %188 = vmatprep.subr.mxu0 0.0
  %189 = vmatpush1.msra.mxu0 0.0
  %190 = vmatprep.subr.mxu0 0.0
  %191 = vmatpush1.msra.mxu0 0.0
  %192 = vmatprep.subr.mxu0 0.0
  %193 = vmatpush1.msra.mxu0 0.0
  %194 = vmatprep.subr.mxu0 0.0
  %195 = vmatpush1.msra.mxu0 0.0
  %196 = vmatprep.subr.mxu0 0.0
  %197 = vmatpush1.msra.mxu0 0.0
  %198 = vmatprep.subr.mxu0 0.0
  %199 = vmatpush1.msra.mxu0 0.0
  %200 = vmatprep.subr.mxu0 0.0
  %201 = vmatpush1.msra.mxu0 0.0
  %202 = vmatprep.subr.mxu0 0.0
  %203 = vmatpush1.msra.mxu0 0.0
  %204 = vmatprep.subr.mxu0 0.0
  %205 = vmatpush1.msra.mxu0 0.0
  %206 = vmatprep.subr.mxu0 0.0
  %207 = vmatpush1.msra.mxu0 0.0
  %208 = vmatprep.subr.mxu0 0.0
  %209 = vmatpush1.msra.mxu0 0.0
  %210 = vmatprep.mubr.f32.mxu0 0.0
  %211 = vmatmul.mubr.f32.gmra.mrb[0].mxu0 %v144
  %v212 = vpop.f32.mrb[0].mxu0
  %v213 = vadd.f32 0.0, %v212
  %v214 = vpop.f32.mrb[0].mxu0
  %215 = vdwg.mxu0
  %v216 = vadd.f32 %v128, %v213
  %v217 = vxor.u32 %v216, 2147483648
  %v218 = vmul.f32 %v217, 1.442695
  %v219 = vpow.pop %v218
  %v220 = vadd.f32 %v219, 1.0
  %v221 = vrcp.pop %v220
  %v222 = vmul.f32 1.0, %v221
  %v224 = vlaneseq
  %v225 = vshrl.u32 %v224, 7
  %v226 = vsub.s32 0, %v225
  %v227 = vrot.slane %v140, %v226
  %228 = vrot.lane.b32.xlu0 %v227, 64
  %v229 = vpop.permute.xlu0 %228
  %v231 = vadd.f32 %v213, %v229
  %233 = vrot.lane.b32.xlu0 %v231, 64
  %v234 = vpop.permute.xlu0 %233
  %v236 = vmul.f32 %v222, %v234
  %238 = vrot.lane.b32.xlu0 %v236, 64
  %v239 = vpop.permute.xlu0 %238
  %v241 = vadd.f32 %v128, %v239
  %v242 = vtanh.pop %v241
  %v243 = vsub.f32 1.0, %v222
  %245 = vrot.lane.b32.xlu0 %v242, 96
  %v246 = vpop.permute.xlu0 %245
  %v248 = vmul.f32 %v243, %v246
  %v249 = vmul.f32 %v222, 0.0
  %v250 = vadd.f32 %v248, %v249
  %252 = vset.pattern.permute.xlu0 0
  %253 = vperm.xlu0 %252, %v141
  %v254 = vpop.permute.xlu0 %253
  %v256 = vmul.f32 %v254, %v250
  %v257 = vsub.f32 1.0, %v141
  %259 = vset.pattern.permute.xlu0 0
  %260 = vperm.xlu0 %259, %v257
  %v261 = vpop.permute.xlu0 %260
  %v263 = vmul.f32 %v261, 0.0
  %v264 = vadd.f32 %v256, %v263
  %266 = vrot.lane.b32.xlu0 %v256, 96
  %v267 = vpop.permute.xlu0 %266
  %vm269 = vcmask 254976
  %270 = vst.msk [vmem:[#allocation2] sm:$0x3] %vm269, %v267
  %272 = vrot.lane.b32.xlu0 %v264, 96
  %v273 = vpop.permute.xlu0 %272
  %v274 = vsel %vm54, %v273, 0
  %276 = vmatprep.subr.mxu0 0.0
  %277 = vmatpush1.msra.mxu0 %v136
  %278 = vmatprep.subr.mxu0 0.0
  %279 = vmatpush1.msra.mxu0 %v137
  %280 = vmatprep.subr.mxu0 0.0
  %281 = vmatpush1.msra.mxu0 %v138
  %282 = vmatprep.subr.mxu0 0.0
  %283 = vmatpush1.msra.mxu0 %v139
  %284 = vmatprep.subr.mxu0 0.0
  %285 = vmatpush1.msra.mxu0 0.0
  %286 = vmatprep.subr.mxu0 0.0
  %287 = vmatpush1.msra.mxu0 0.0
  %288 = vmatprep.subr.mxu0 0.0
  %289 = vmatpush1.msra.mxu0 0.0
  %290 = vmatprep.subr.mxu0 0.0
  %291 = vmatpush1.msra.mxu0 0.0
  %292 = vmatprep.subr.mxu0 0.0
  %293 = vmatpush1.msra.mxu0 0.0
  %294 = vmatprep.subr.mxu0 0.0
  %295 = vmatpush1.msra.mxu0 0.0
  %296 = vmatprep.subr.mxu0 0.0
  %297 = vmatpush1.msra.mxu0 0.0
  %298 = vmatprep.subr.mxu0 0.0
  %299 = vmatpush1.msra.mxu0 0.0
  %300 = vmatprep.subr.mxu0 0.0
  %301 = vmatpush1.msra.mxu0 0.0
  %302 = vmatprep.subr.mxu0 0.0
  %303 = vmatpush1.msra.mxu0 0.0
  %304 = vmatprep.subr.mxu0 0.0
  %305 = vmatpush1.msra.mxu0 0.0
  %306 = vmatprep.subr.mxu0 0.0
  %307 = vmatpush1.msra.mxu0 0.0
  %308 = vmatprep.subr.mxu0 0.0
  %309 = vmatpush1.msra.mxu0 0.0
  %310 = vmatprep.subr.mxu0 0.0
  %311 = vmatpush1.msra.mxu0 0.0
  %312 = vmatprep.subr.mxu0 0.0
  %313 = vmatpush1.msra.mxu0 0.0
  %314 = vmatprep.subr.mxu0 0.0
  %315 = vmatpush1.msra.mxu0 0.0
  %316 = vmatprep.subr.mxu0 0.0
  %317 = vmatpush1.msra.mxu0 0.0
  %318 = vmatprep.subr.mxu0 0.0
  %319 = vmatpush1.msra.mxu0 0.0
  %320 = vmatprep.subr.mxu0 0.0
  %321 = vmatpush1.msra.mxu0 0.0
  %322 = vmatprep.subr.mxu0 0.0
  %323 = vmatpush1.msra.mxu0 0.0
  %324 = vmatprep.subr.mxu0 0.0
  %325 = vmatpush1.msra.mxu0 0.0
  %326 = vmatprep.subr.mxu0 0.0
  %327 = vmatpush1.msra.mxu0 0.0
  %328 = vmatprep.subr.mxu0 0.0
  %329 = vmatpush1.msra.mxu0 0.0
  %330 = vmatprep.subr.mxu0 0.0
  %331 = vmatpush1.msra.mxu0 0.0
  %332 = vmatprep.subr.mxu0 0.0
  %333 = vmatpush1.msra.mxu0 0.0
  %334 = vmatprep.subr.mxu0 0.0
  %335 = vmatpush1.msra.mxu0 0.0
  %336 = vmatprep.subr.mxu0 0.0
  %337 = vmatpush1.msra.mxu0 0.0
  %338 = vmatprep.subr.mxu0 0.0
  %339 = vmatpush1.msra.mxu0 0.0
  %340 = vmatprep.mubr.f32.mxu0 0.0
  %341 = vmatmul.mubr.f32.gmra.mrb[0].mxu0 %v274
  %v342 = vpop.f32.mrb[0].mxu0
  %v343 = vadd.f32 0.0, %v342
  %v344 = vpop.f32.mrb[0].mxu0
  %345 = vdwg.mxu0
  %v347 = vrot.slane %v343, 6
  %v349 = vadd.f32 %v128, %v347
  %v350 = vxor.u32 %v349, 2147483648
  %v351 = vmul.f32 %v350, 1.442695
  %v352 = vpow.pop %v351
  %v353 = vadd.f32 %v352, 1.0
  %v354 = vrcp.pop %v353
  %v355 = vmul.f32 1.0, %v354
  %v356 = vadd.f32 %v343, %v229
  %v358 = vrot.slane %v356, 6
  %359 = vrot.lane.b32.xlu0 %v358, 64
  %v360 = vpop.permute.xlu0 %359
  %v362 = vmul.f32 %v355, %v360
  %364 = vrot.lane.b32.xlu0 %v362, 64
  %v365 = vpop.permute.xlu0 %364
  %v367 = vadd.f32 %v128, %v365
  %v368 = vtanh.pop %v367
  %v369 = vsub.f32 1.0, %v355
  %371 = vrot.lane.b32.xlu0 %v368, 96
  %v372 = vpop.permute.xlu0 %371
  %v374 = vmul.f32 %v369, %v372
  %v375 = vrot.slane %v264, 6
  %v377 = vmul.f32 %v355, %v375
  %v378 = vadd.f32 %v374, %v377
  %v379 = vmul.f32 %v254, %v378
  %380 = vrot.lane.b32.xlu0 %v375, 96
  %v381 = vpop.permute.xlu0 %380
  %v383 = vmul.f32 %v261, %v381
  %385 = vrot.lane.b32.xlu0 %v383, 32
  %v386 = vpop.permute.xlu0 %385
  %v388 = vadd.f32 %v379, %v386
  %390 = vrot.lane.b32.xlu0 %v379, 96
  %v391 = vpop.permute.xlu0 %390
  %vm393 = vcmask 257026
  %394 = vst.msk [vmem:[#allocation2] sm:$0xc] %vm393, %v391
  %v396 = vrot.slane %v388, 2
  %397 = vrot.lane.b32.xlu0 %v396, 96
  %v398 = vpop.permute.xlu0 %397
  %v399 = vsel %vm54, %v398, 0
  %401 = vmatprep.subr.mxu0 0.0
  %402 = vmatpush1.msra.mxu0 %v136
  %403 = vmatprep.subr.mxu0 0.0
  %404 = vmatpush1.msra.mxu0 %v137
  %405 = vmatprep.subr.mxu0 0.0
  %406 = vmatpush1.msra.mxu0 %v138
  %407 = vmatprep.subr.mxu0 0.0
  %408 = vmatpush1.msra.mxu0 %v139
  %409 = vmatprep.subr.mxu0 0.0
  %410 = vmatpush1.msra.mxu0 0.0
  %411 = vmatprep.subr.mxu0 0.0
  %412 = vmatpush1.msra.mxu0 0.0
  %413 = vmatprep.subr.mxu0 0.0
  %414 = vmatpush1.msra.mxu0 0.0
  %415 = vmatprep.subr.mxu0 0.0
  %416 = vmatpush1.msra.mxu0 0.0
  %417 = vmatprep.subr.mxu0 0.0
  %418 = vmatpush1.msra.mxu0 0.0
  %419 = vmatprep.subr.mxu0 0.0
  %420 = vmatpush1.msra.mxu0 0.0
  %421 = vmatprep.subr.mxu0 0.0
  %422 = vmatpush1.msra.mxu0 0.0
  %423 = vmatprep.subr.mxu0 0.0
  %424 = vmatpush1.msra.mxu0 0.0
  %425 = vmatprep.subr.mxu0 0.0
  %426 = vmatpush1.msra.mxu0 0.0
  %427 = vmatprep.subr.mxu0 0.0
  %428 = vmatpush1.msra.mxu0 0.0
  %429 = vmatprep.subr.mxu0 0.0
  %430 = vmatpush1.msra.mxu0 0.0
  %431 = vmatprep.subr.mxu0 0.0
  %432 = vmatpush1.msra.mxu0 0.0
  %433 = vmatprep.subr.mxu0 0.0
  %434 = vmatpush1.msra.mxu0 0.0
  %435 = vmatprep.subr.mxu0 0.0
  %436 = vmatpush1.msra.mxu0 0.0
  %437 = vmatprep.subr.mxu0 0.0
  %438 = vmatpush1.msra.mxu0 0.0
  %439 = vmatprep.subr.mxu0 0.0
  %440 = vmatpush1.msra.mxu0 0.0
  %441 = vmatprep.subr.mxu0 0.0
  %442 = vmatpush1.msra.mxu0 0.0
  %443 = vmatprep.subr.mxu0 0.0
  %444 = vmatpush1.msra.mxu0 0.0
  %445 = vmatprep.subr.mxu0 0.0
  %446 = vmatpush1.msra.mxu0 0.0
  %447 = vmatprep.subr.mxu0 0.0
  %448 = vmatpush1.msra.mxu0 0.0
  %449 = vmatprep.subr.mxu0 0.0
  %450 = vmatpush1.msra.mxu0 0.0
  %451 = vmatprep.subr.mxu0 0.0
  %452 = vmatpush1.msra.mxu0 0.0
  %453 = vmatprep.subr.mxu0 0.0
  %454 = vmatpush1.msra.mxu0 0.0
  %455 = vmatprep.subr.mxu0 0.0
  %456 = vmatpush1.msra.mxu0 0.0
  %457 = vmatprep.subr.mxu0 0.0
  %458 = vmatpush1.msra.mxu0 0.0
  %459 = vmatprep.subr.mxu0 0.0
  %460 = vmatpush1.msra.mxu0 0.0
  %461 = vmatprep.subr.mxu0 0.0
  %462 = vmatpush1.msra.mxu0 0.0
  %463 = vmatprep.subr.mxu0 0.0
  %464 = vmatpush1.msra.mxu0 0.0
  %465 = vmatprep.mubr.f32.mxu0 0.0
  %466 = vmatmul.mubr.f32.gmra.mrb[0].mxu0 %v399
  %v467 = vpop.f32.mrb[0].mxu0
  %v468 = vadd.f32 0.0, %v467
  %v469 = vpop.f32.mrb[0].mxu0
  %470 = vdwg.mxu0
  %v472 = vrot.slane %v468, 4
  %v474 = vadd.f32 %v128, %v472
  %v475 = vxor.u32 %v474, 2147483648
  %v476 = vmul.f32 %v475, 1.442695
  %v477 = vpow.pop %v476
  %v478 = vadd.f32 %v477, 1.0
  %v479 = vrcp.pop %v478
  %v480 = vmul.f32 1.0, %v479
  %v481 = vadd.f32 %v468, %v229
  %v483 = vrot.slane %v481, 4
  %484 = vrot.lane.b32.xlu0 %v483, 64
  %v485 = vpop.permute.xlu0 %484
  %v487 = vmul.f32 %v480, %v485
  %489 = vrot.lane.b32.xlu0 %v487, 64
  %v490 = vpop.permute.xlu0 %489
  %v492 = vadd.f32 %v128, %v490
  %v493 = vtanh.pop %v492
  %v494 = vsub.f32 1.0, %v480
  %496 = vrot.lane.b32.xlu0 %v493, 96
  %v497 = vpop.permute.xlu0 %496
  %v499 = vmul.f32 %v494, %v497
  %v500 = vrot.slane %v388, 6
  %v502 = vmul.f32 %v480, %v500
  %v503 = vadd.f32 %v499, %v502
  %v504 = vmul.f32 %v254, %v503
  %505 = vrot.lane.b32.xlu0 %v500, 96
  %v506 = vpop.permute.xlu0 %505
  %v508 = vmul.f32 %v261, %v506
  %510 = vrot.lane.b32.xlu0 %v508, 32
  %v511 = vpop.permute.xlu0 %510
  %v513 = vadd.f32 %v504, %v511
  %515 = vrot.lane.b32.xlu0 %v504, 96
  %v516 = vpop.permute.xlu0 %515
  %vm518 = vcmask 259076
  %519 = vst.msk [vmem:[#allocation2] sm:$0x30] %vm518, %v516
  %v521 = vrot.slane %v513, 4
  %522 = vrot.lane.b32.xlu0 %v521, 96
  %v523 = vpop.permute.xlu0 %522
  %v524 = vsel %vm54, %v523, 0
  %526 = vmatprep.subr.mxu0 0.0
  %527 = vmatpush1.msra.mxu0 %v136
  %528 = vmatprep.subr.mxu0 0.0
  %529 = vmatpush1.msra.mxu0 %v137
  %530 = vmatprep.subr.mxu0 0.0
  %531 = vmatpush1.msra.mxu0 %v138
  %532 = vmatprep.subr.mxu0 0.0
  %533 = vmatpush1.msra.mxu0 %v139
  %534 = vmatprep.subr.mxu0 0.0
  %535 = vmatpush1.msra.mxu0 0.0
  %536 = vmatprep.subr.mxu0 0.0
  %537 = vmatpush1.msra.mxu0 0.0
  %538 = vmatprep.subr.mxu0 0.0
  %539 = vmatpush1.msra.mxu0 0.0
  %540 = vmatprep.subr.mxu0 0.0
  %541 = vmatpush1.msra.mxu0 0.0
  %542 = vmatprep.subr.mxu0 0.0
  %543 = vmatpush1.msra.mxu0 0.0
  %544 = vmatprep.subr.mxu0 0.0
  %545 = vmatpush1.msra.mxu0 0.0
  %546 = vmatprep.subr.mxu0 0.0
  %547 = vmatpush1.msra.mxu0 0.0
  %548 = vmatprep.subr.mxu0 0.0
  %549 = vmatpush1.msra.mxu0 0.0
  %550 = vmatprep.subr.mxu0 0.0
  %551 = vmatpush1.msra.mxu0 0.0
  %552 = vmatprep.subr.mxu0 0.0
  %553 = vmatpush1.msra.mxu0 0.0
  %554 = vmatprep.subr.mxu0 0.0
  %555 = vmatpush1.msra.mxu0 0.0
  %556 = vmatprep.subr.mxu0 0.0
  %557 = vmatpush1.msra.mxu0 0.0
  %558 = vmatprep.subr.mxu0 0.0
  %559 = vmatpush1.msra.mxu0 0.0
  %560 = vmatprep.subr.mxu0 0.0
  %561 = vmatpush1.msra.mxu0 0.0
  %562 = vmatprep.subr.mxu0 0.0
  %563 = vmatpush1.msra.mxu0 0.0
  %564 = vmatprep.subr.mxu0 0.0
  %565 = vmatpush1.msra.mxu0 0.0
  %566 = vmatprep.subr.mxu0 0.0
  %567 = vmatpush1.msra.mxu0 0.0
  %568 = vmatprep.subr.mxu0 0.0
  %569 = vmatpush1.msra.mxu0 0.0
  %570 = vmatprep.subr.mxu0 0.0
  %571 = vmatpush1.msra.mxu0 0.0
  %572 = vmatprep.subr.mxu0 0.0
  %573 = vmatpush1.msra.mxu0 0.0
  %574 = vmatprep.subr.mxu0 0.0
  %575 = vmatpush1.msra.mxu0 0.0
  %576 = vmatprep.subr.mxu0 0.0
  %577 = vmatpush1.msra.mxu0 0.0
  %578 = vmatprep.subr.mxu0 0.0
  %579 = vmatpush1.msra.mxu0 0.0
  %580 = vmatprep.subr.mxu0 0.0
  %581 = vmatpush1.msra.mxu0 0.0
  %582 = vmatprep.subr.mxu0 0.0
  %583 = vmatpush1.msra.mxu0 0.0
  %584 = vmatprep.subr.mxu0 0.0
  %585 = vmatpush1.msra.mxu0 0.0
  %586 = vmatprep.subr.mxu0 0.0
  %587 = vmatpush1.msra.mxu0 0.0
  %588 = vmatprep.subr.mxu0 0.0
  %589 = vmatpush1.msra.mxu0 0.0
  %590 = vmatprep.mubr.f32.mxu0 0.0
  %591 = vmatmul.mubr.f32.gmra.mrb[0].mxu0 %v524
  %v592 = vpop.f32.mrb[0].mxu0
  %v593 = vadd.f32 0.0, %v592
  %v594 = vpop.f32.mrb[0].mxu0
  %595 = vdwg.mxu0
  %v597 = vrot.slane %v593, 2
  %v599 = vadd.f32 %v128, %v597
  %v600 = vxor.u32 %v599, 2147483648
  %v601 = vmul.f32 %v600, 1.442695
  %v602 = vpow.pop %v601
  %v603 = vadd.f32 %v602, 1.0
  %v604 = vrcp.pop %v603
  %v605 = vmul.f32 1.0, %v604
  %v606 = vadd.f32 %v593, %v229
  %v608 = vrot.slane %v606, 2
  %609 = vrot.lane.b32.xlu0 %v608, 64
  %v610 = vpop.permute.xlu0 %609
  %v612 = vmul.f32 %v605, %v610
  %614 = vrot.lane.b32.xlu0 %v612, 64
  %v615 = vpop.permute.xlu0 %614
  %v617 = vadd.f32 %v128, %v615
  %v618 = vtanh.pop %v617
  %v619 = vsub.f32 1.0, %v605
  %621 = vrot.lane.b32.xlu0 %v618, 96
  %v622 = vpop.permute.xlu0 %621
  %v624 = vmul.f32 %v619, %v622
  %v625 = vrot.slane %v513, 6
  %v627 = vmul.f32 %v605, %v625
  %v628 = vadd.f32 %v624, %v627
  %v629 = vmul.f32 %v254, %v628
  %630 = vrot.lane.b32.xlu0 %v625, 96
  %v631 = vpop.permute.xlu0 %630
  %v633 = vmul.f32 %v261, %v631
  %635 = vrot.lane.b32.xlu0 %v633, 32
  %v636 = vpop.permute.xlu0 %635
  %v638 = vadd.f32 %v629, %v636
  %640 = vrot.lane.b32.xlu0 %v629, 96
  %v641 = vpop.permute.xlu0 %640
  %vm643 = vcmask 261126
  %644 = vst.msk [vmem:[#allocation2] sm:$0xc0] %vm643, %v641
  %v646 = vrot.slane %v638, 6
  %647 = vrot.lane.b32.xlu0 %v646, 96
  %v648 = vpop.permute.xlu0 %647
  %v649 = vsel %vm54, %v648, 0
  %651 = vmatprep.subr.mxu0 0.0
  %652 = vmatpush1.msra.mxu0 %v136
  %653 = vmatprep.subr.mxu0 0.0
  %654 = vmatpush1.msra.mxu0 %v137
  %655 = vmatprep.subr.mxu0 0.0
  %656 = vmatpush1.msra.mxu0 %v138
  %657 = vmatprep.subr.mxu0 0.0
  %658 = vmatpush1.msra.mxu0 %v139
  %659 = vmatprep.subr.mxu0 0.0
  %660 = vmatpush1.msra.mxu0 0.0
  %661 = vmatprep.subr.mxu0 0.0
  %662 = vmatpush1.msra.mxu0 0.0
  %663 = vmatprep.subr.mxu0 0.0
  %664 = vmatpush1.msra.mxu0 0.0
  %665 = vmatprep.subr.mxu0 0.0
  %666 = vmatpush1.msra.mxu0 0.0
  %667 = vmatprep.subr.mxu0 0.0
  %668 = vmatpush1.msra.mxu0 0.0
  %669 = vmatprep.subr.mxu0 0.0
  %670 = vmatpush1.msra.mxu0 0.0
  %671 = vmatprep.subr.mxu0 0.0
  %672 = vmatpush1.msra.mxu0 0.0
  %673 = vmatprep.subr.mxu0 0.0
  %674 = vmatpush1.msra.mxu0 0.0
  %675 = vmatprep.subr.mxu0 0.0
  %676 = vmatpush1.msra.mxu0 0.0
  %677 = vmatprep.subr.mxu0 0.0
  %678 = vmatpush1.msra.mxu0 0.0
  %679 = vmatprep.subr.mxu0 0.0
  %680 = vmatpush1.msra.mxu0 0.0
  %681 = vmatprep.subr.mxu0 0.0
  %682 = vmatpush1.msra.mxu0 0.0
  %683 = vmatprep.subr.mxu0 0.0
  %684 = vmatpush1.msra.mxu0 0.0
  %685 = vmatprep.subr.mxu0 0.0
  %686 = vmatpush1.msra.mxu0 0.0
  %687 = vmatprep.subr.mxu0 0.0
  %688 = vmatpush1.msra.mxu0 0.0
  %689 = vmatprep.subr.mxu0 0.0
  %690 = vmatpush1.msra.mxu0 0.0
  %691 = vmatprep.subr.mxu0 0.0
  %692 = vmatpush1.msra.mxu0 0.0
  %693 = vmatprep.subr.mxu0 0.0
  %694 = vmatpush1.msra.mxu0 0.0
  %695 = vmatprep.subr.mxu0 0.0
  %696 = vmatpush1.msra.mxu0 0.0
  %697 = vmatprep.subr.mxu0 0.0
  %698 = vmatpush1.msra.mxu0 0.0
  %699 = vmatprep.subr.mxu0 0.0
  %700 = vmatpush1.msra.mxu0 0.0
  %701 = vmatprep.subr.mxu0 0.0
  %702 = vmatpush1.msra.mxu0 0.0
  %703 = vmatprep.subr.mxu0 0.0
  %704 = vmatpush1.msra.mxu0 0.0
  %705 = vmatprep.subr.mxu0 0.0
  %706 = vmatpush1.msra.mxu0 0.0
  %707 = vmatprep.subr.mxu0 0.0
  %708 = vmatpush1.msra.mxu0 0.0
  %709 = vmatprep.subr.mxu0 0.0
  %710 = vmatpush1.msra.mxu0 0.0
  %711 = vmatprep.subr.mxu0 0.0
  %712 = vmatpush1.msra.mxu0 0.0
  %713 = vmatprep.subr.mxu0 0.0
  %714 = vmatpush1.msra.mxu0 0.0
  %715 = vmatprep.mubr.f32.mxu0 0.0
  %716 = vmatmul.mubr.f32.gmra.mrb[0].mxu0 %v649
  %v717 = vpop.f32.mrb[0].mxu0
  %v718 = vadd.f32 0.0, %v717
  %v719 = vpop.f32.mrb[0].mxu0
  %720 = vdwg.mxu0
  %v721 = vadd.f32 %v133, %v718
  %v722 = vxor.u32 %v721, 2147483648
  %v723 = vmul.f32 %v722, 1.442695
  %v724 = vpow.pop %v723
  %v725 = vadd.f32 %v724, 1.0
  %v726 = vrcp.pop %v725
  %v727 = vmul.f32 1.0, %v726
  %v728 = vadd.f32 %v718, %v229
  %730 = vrot.lane.b32.xlu0 %v728, 64
  %v731 = vpop.permute.xlu0 %730
  %v733 = vmul.f32 %v727, %v731
  %735 = vrot.lane.b32.xlu0 %v733, 64
  %v736 = vpop.permute.xlu0 %735
  %v738 = vadd.f32 %v133, %v736
  %v739 = vtanh.pop %v738
  %v740 = vsub.f32 1.0, %v727
  %742 = vrot.lane.b32.xlu0 %v739, 96
  %v743 = vpop.permute.xlu0 %742
  %v745 = vmul.f32 %v740, %v743
  %v747 = vmul.f32 %v727, %v646
  %v748 = vadd.f32 %v745, %v747
  %750 = vset.pattern.permute.xlu0 0
  %751 = vperm.xlu0 %750, %v142
  %v752 = vpop.permute.xlu0 %751
  %v754 = vmul.f32 %v752, %v748
  %v755 = vsub.f32 1.0, %v142
  %757 = vset.pattern.permute.xlu0 0
  %758 = vperm.xlu0 %757, %v755
  %v759 = vpop.permute.xlu0 %758
  %v762 = vmul.f32 %v759, %v648
  %764 = vrot.lane.b32.xlu0 %v762, 32
  %v765 = vpop.permute.xlu0 %764
  %v767 = vadd.f32 %v754, %v765
  %769 = vrot.lane.b32.xlu0 %v754, 96
  %v770 = vpop.permute.xlu0 %769
  %772 = vst.msk [vmem:[#allocation2 + $0x8] sm:$0x3] %vm269, %v770
  %774 = vrot.lane.b32.xlu0 %v767, 96
  %v775 = vpop.permute.xlu0 %774
  %v776 = vsel %vm54, %v775, 0
  %778 = vmatprep.subr.mxu0 0.0
  %779 = vmatpush1.msra.mxu0 %v136
  %780 = vmatprep.subr.mxu0 0.0
  %781 = vmatpush1.msra.mxu0 %v137
  %782 = vmatprep.subr.mxu0 0.0
  %783 = vmatpush1.msra.mxu0 %v138
  %784 = vmatprep.subr.mxu0 0.0
  %785 = vmatpush1.msra.mxu0 %v139
  %786 = vmatprep.subr.mxu0 0.0
  %787 = vmatpush1.msra.mxu0 0.0
  %788 = vmatprep.subr.mxu0 0.0
  %789 = vmatpush1.msra.mxu0 0.0
  %790 = vmatprep.subr.mxu0 0.0
  %791 = vmatpush1.msra.mxu0 0.0
  %792 = vmatprep.subr.mxu0 0.0
  %793 = vmatpush1.msra.mxu0 0.0
  %794 = vmatprep.subr.mxu0 0.0
  %795 = vmatpush1.msra.mxu0 0.0
  %796 = vmatprep.subr.mxu0 0.0
  %797 = vmatpush1.msra.mxu0 0.0
  %798 = vmatprep.subr.mxu0 0.0
  %799 = vmatpush1.msra.mxu0 0.0
  %800 = vmatprep.subr.mxu0 0.0
  %801 = vmatpush1.msra.mxu0 0.0
  %802 = vmatprep.subr.mxu0 0.0
  %803 = vmatpush1.msra.mxu0 0.0
  %804 = vmatprep.subr.mxu0 0.0
  %805 = vmatpush1.msra.mxu0 0.0
  %806 = vmatprep.subr.mxu0 0.0
  %807 = vmatpush1.msra.mxu0 0.0
  %808 = vmatprep.subr.mxu0 0.0
  %809 = vmatpush1.msra.mxu0 0.0
  %810 = vmatprep.subr.mxu0 0.0
  %811 = vmatpush1.msra.mxu0 0.0
  %812 = vmatprep.subr.mxu0 0.0
  %813 = vmatpush1.msra.mxu0 0.0
  %814 = vmatprep.subr.mxu0 0.0
  %815 = vmatpush1.msra.mxu0 0.0
  %816 = vmatprep.subr.mxu0 0.0
  %817 = vmatpush1.msra.mxu0 0.0
  %818 = vmatprep.subr.mxu0 0.0
  %819 = vmatpush1.msra.mxu0 0.0
  %820 = vmatprep.subr.mxu0 0.0
  %821 = vmatpush1.msra.mxu0 0.0
  %822 = vmatprep.subr.mxu0 0.0
  %823 = vmatpush1.msra.mxu0 0.0
  %824 = vmatprep.subr.mxu0 0.0
  %825 = vmatpush1.msra.mxu0 0.0
  %826 = vmatprep.subr.mxu0 0.0
  %827 = vmatpush1.msra.mxu0 0.0
  %828 = vmatprep.subr.mxu0 0.0
  %829 = vmatpush1.msra.mxu0 0.0
  %830 = vmatprep.subr.mxu0 0.0
  %831 = vmatpush1.msra.mxu0 0.0
  %832 = vmatprep.subr.mxu0 0.0
  %833 = vmatpush1.msra.mxu0 0.0
  %834 = vmatprep.subr.mxu0 0.0
  %835 = vmatpush1.msra.mxu0 0.0
  %836 = vmatprep.subr.mxu0 0.0
  %837 = vmatpush1.msra.mxu0 0.0
  %838 = vmatprep.subr.mxu0 0.0
  %839 = vmatpush1.msra.mxu0 0.0
  %840 = vmatprep.subr.mxu0 0.0
  %841 = vmatpush1.msra.mxu0 0.0
  %842 = vmatprep.mubr.f32.mxu0 0.0
  %843 = vmatmul.mubr.f32.gmra.mrb[0].mxu0 %v776
  %v844 = vpop.f32.mrb[0].mxu0
  %v845 = vadd.f32 0.0, %v844
  %v846 = vpop.f32.mrb[0].mxu0
  %847 = vdwg.mxu0
  %v849 = vrot.slane %v845, 6
  %v851 = vadd.f32 %v133, %v849
  %v852 = vxor.u32 %v851, 2147483648
  %v853 = vmul.f32 %v852, 1.442695
  %v854 = vpow.pop %v853
  %v855 = vadd.f32 %v854, 1.0
  %v856 = vrcp.pop %v855
  %v857 = vmul.f32 1.0, %v856
  %v858 = vadd.f32 %v845, %v229
  %v860 = vrot.slane %v858, 6
  %861 = vrot.lane.b32.xlu0 %v860, 64
  %v862 = vpop.permute.xlu0 %861
  %v864 = vmul.f32 %v857, %v862
  %866 = vrot.lane.b32.xlu0 %v864, 64
  %v867 = vpop.permute.xlu0 %866
  %v869 = vadd.f32 %v133, %v867
  %v870 = vtanh.pop %v869
  %v871 = vsub.f32 1.0, %v857
  %873 = vrot.lane.b32.xlu0 %v870, 96
  %v874 = vpop.permute.xlu0 %873
  %v876 = vmul.f32 %v871, %v874
  %v877 = vrot.slane %v767, 6
  %v879 = vmul.f32 %v857, %v877
  %v880 = vadd.f32 %v876, %v879
  %v881 = vmul.f32 %v752, %v880
  %882 = vrot.lane.b32.xlu0 %v877, 96
  %v883 = vpop.permute.xlu0 %882
  %v885 = vmul.f32 %v759, %v883
  %887 = vrot.lane.b32.xlu0 %v885, 32
  %v888 = vpop.permute.xlu0 %887
  %v890 = vadd.f32 %v881, %v888
  %892 = vrot.lane.b32.xlu0 %v881, 96
  %v893 = vpop.permute.xlu0 %892
  %895 = vst.msk [vmem:[#allocation2 + $0x8] sm:$0xc] %vm393, %v893
  %v897 = vrot.slane %v890, 2
  %898 = vrot.lane.b32.xlu0 %v897, 96
  %v899 = vpop.permute.xlu0 %898
  %v900 = vsel %vm54, %v899, 0
  %902 = vmatprep.subr.mxu0 0.0
  %903 = vmatpush1.msra.mxu0 %v136
  %904 = vmatprep.subr.mxu0 0.0
  %905 = vmatpush1.msra.mxu0 %v137
  %906 = vmatprep.subr.mxu0 0.0
  %907 = vmatpush1.msra.mxu0 %v138
  %908 = vmatprep.subr.mxu0 0.0
  %909 = vmatpush1.msra.mxu0 %v139
  %910 = vmatprep.subr.mxu0 0.0
  %911 = vmatpush1.msra.mxu0 0.0
  %912 = vmatprep.subr.mxu0 0.0
  %913 = vmatpush1.msra.mxu0 0.0
  %914 = vmatprep.subr.mxu0 0.0
  %915 = vmatpush1.msra.mxu0 0.0
  %916 = vmatprep.subr.mxu0 0.0
  %917 = vmatpush1.msra.mxu0 0.0
  %918 = vmatprep.subr.mxu0 0.0
  %919 = vmatpush1.msra.mxu0 0.0
  %920 = vmatprep.subr.mxu0 0.0
  %921 = vmatpush1.msra.mxu0 0.0
  %922 = vmatprep.subr.mxu0 0.0
  %923 = vmatpush1.msra.mxu0 0.0
  %924 = vmatprep.subr.mxu0 0.0
  %925 = vmatpush1.msra.mxu0 0.0
  %926 = vmatprep.subr.mxu0 0.0
  %927 = vmatpush1.msra.mxu0 0.0
  %928 = vmatprep.subr.mxu0 0.0
  %929 = vmatpush1.msra.mxu0 0.0
  %930 = vmatprep.subr.mxu0 0.0
  %931 = vmatpush1.msra.mxu0 0.0
  %932 = vmatprep.subr.mxu0 0.0
  %933 = vmatpush1.msra.mxu0 0.0
  %934 = vmatprep.subr.mxu0 0.0
  %935 = vmatpush1.msra.mxu0 0.0
  %936 = vmatprep.subr.mxu0 0.0
  %937 = vmatpush1.msra.mxu0 0.0
  %938 = vmatprep.subr.mxu0 0.0
  %939 = vmatpush1.msra.mxu0 0.0
  %940 = vmatprep.subr.mxu0 0.0
  %941 = vmatpush1.msra.mxu0 0.0
  %942 = vmatprep.subr.mxu0 0.0
  %943 = vmatpush1.msra.mxu0 0.0
  %944 = vmatprep.subr.mxu0 0.0
  %945 = vmatpush1.msra.mxu0 0.0
  %946 = vmatprep.subr.mxu0 0.0
  %947 = vmatpush1.msra.mxu0 0.0
  %948 = vmatprep.subr.mxu0 0.0
  %949 = vmatpush1.msra.mxu0 0.0
  %950 = vmatprep.subr.mxu0 0.0
  %951 = vmatpush1.msra.mxu0 0.0
  %952 = vmatprep.subr.mxu0 0.0
  %953 = vmatpush1.msra.mxu0 0.0
  %954 = vmatprep.subr.mxu0 0.0
  %955 = vmatpush1.msra.mxu0 0.0
  %956 = vmatprep.subr.mxu0 0.0
  %957 = vmatpush1.msra.mxu0 0.0
  %958 = vmatprep.subr.mxu0 0.0
  %959 = vmatpush1.msra.mxu0 0.0
  %960 = vmatprep.subr.mxu0 0.0
  %961 = vmatpush1.msra.mxu0 0.0
  %962 = vmatprep.subr.mxu0 0.0
  %963 = vmatpush1.msra.mxu0 0.0
  %964 = vmatprep.subr.mxu0 0.0
  %965 = vmatpush1.msra.mxu0 0.0
  %966 = vmatprep.mubr.f32.mxu0 0.0
  %967 = vmatmul.mubr.f32.gmra.mrb[0].mxu0 %v900
  %v968 = vpop.f32.mrb[0].mxu0
  %v969 = vadd.f32 0.0, %v968
  %v970 = vpop.f32.mrb[0].mxu0
  %971 = vdwg.mxu0
  %v973 = vrot.slane %v969, 4
  %v975 = vadd.f32 %v133, %v973
  %v976 = vxor.u32 %v975, 2147483648
  %v977 = vmul.f32 %v976, 1.442695
  %v978 = vpow.pop %v977
  %v979 = vadd.f32 %v978, 1.0
  %v980 = vrcp.pop %v979
  %v981 = vmul.f32 1.0, %v980
  %v982 = vadd.f32 %v969, %v229
  %v984 = vrot.slane %v982, 4
  %985 = vrot.lane.b32.xlu0 %v984, 64
  %v986 = vpop.permute.xlu0 %985
  %v988 = vmul.f32 %v981, %v986
  %990 = vrot.lane.b32.xlu0 %v988, 64
  %v991 = vpop.permute.xlu0 %990
  %v993 = vadd.f32 %v133, %v991
  %v994 = vtanh.pop %v993
  %v995 = vsub.f32 1.0, %v981
  %997 = vrot.lane.b32.xlu0 %v994, 96
  %v998 = vpop.permute.xlu0 %997
  %v1000 = vmul.f32 %v995, %v998
  %v1001 = vrot.slane %v890, 6
  %v1003 = vmul.f32 %v981, %v1001
  %v1004 = vadd.f32 %v1000, %v1003
  %v1005 = vmul.f32 %v752, %v1004
  %1006 = vrot.lane.b32.xlu0 %v1001, 96
  %v1007 = vpop.permute.xlu0 %1006
  %v1009 = vmul.f32 %v759, %v1007
  %1011 = vrot.lane.b32.xlu0 %v1009, 32
  %v1012 = vpop.permute.xlu0 %1011
  %v1014 = vadd.f32 %v1005, %v1012
  %1016 = vrot.lane.b32.xlu0 %v1005, 96
  %v1017 = vpop.permute.xlu0 %1016
  %1019 = vst.msk [vmem:[#allocation2 + $0x8] sm:$0x30] %vm518, %v1017
  %v1021 = vrot.slane %v1014, 4
  %1022 = vrot.lane.b32.xlu0 %v1021, 96
  %v1023 = vpop.permute.xlu0 %1022
  %v1024 = vsel %vm54, %v1023, 0
  %1026 = vmatprep.subr.mxu0 0.0
  %1027 = vmatpush1.msra.mxu0 %v136
  %1028 = vmatprep.subr.mxu0 0.0
  %1029 = vmatpush1.msra.mxu0 %v137
  %1030 = vmatprep.subr.mxu0 0.0
  %1031 = vmatpush1.msra.mxu0 %v138
  %1032 = vmatprep.subr.mxu0 0.0
  %1033 = vmatpush1.msra.mxu0 %v139
  %1034 = vmatprep.subr.mxu0 0.0
  %1035 = vmatpush1.msra.mxu0 0.0
  %1036 = vmatprep.subr.mxu0 0.0
  %1037 = vmatpush1.msra.mxu0 0.0
  %1038 = vmatprep.subr.mxu0 0.0
  %1039 = vmatpush1.msra.mxu0 0.0
  %1040 = vmatprep.subr.mxu0 0.0
  %1041 = vmatpush1.msra.mxu0 0.0
  %1042 = vmatprep.subr.mxu0 0.0
  %1043 = vmatpush1.msra.mxu0 0.0
  %1044 = vmatprep.subr.mxu0 0.0
  %1045 = vmatpush1.msra.mxu0 0.0
  %1046 = vmatprep.subr.mxu0 0.0
  %1047 = vmatpush1.msra.mxu0 0.0
  %1048 = vmatprep.subr.mxu0 0.0
  %1049 = vmatpush1.msra.mxu0 0.0
  %1050 = vmatprep.subr.mxu0 0.0
  %1051 = vmatpush1.msra.mxu0 0.0
  %1052 = vmatprep.subr.mxu0 0.0
  %1053 = vmatpush1.msra.mxu0 0.0
  %1054 = vmatprep.subr.mxu0 0.0
  %1055 = vmatpush1.msra.mxu0 0.0
  %1056 = vmatprep.subr.mxu0 0.0
  %1057 = vmatpush1.msra.mxu0 0.0
  %1058 = vmatprep.subr.mxu0 0.0
  %1059 = vmatpush1.msra.mxu0 0.0
  %1060 = vmatprep.subr.mxu0 0.0
  %1061 = vmatpush1.msra.mxu0 0.0
  %1062 = vmatprep.subr.mxu0 0.0
  %1063 = vmatpush1.msra.mxu0 0.0
  %1064 = vmatprep.subr.mxu0 0.0
  %1065 = vmatpush1.msra.mxu0 0.0
  %1066 = vmatprep.subr.mxu0 0.0
  %1067 = vmatpush1.msra.mxu0 0.0
  %1068 = vmatprep.subr.mxu0 0.0
  %1069 = vmatpush1.msra.mxu0 0.0
  %1070 = vmatprep.subr.mxu0 0.0
  %1071 = vmatpush1.msra.mxu0 0.0
  %1072 = vmatprep.subr.mxu0 0.0
  %1073 = vmatpush1.msra.mxu0 0.0
  %1074 = vmatprep.subr.mxu0 0.0
  %1075 = vmatpush1.msra.mxu0 0.0
  %1076 = vmatprep.subr.mxu0 0.0
  %1077 = vmatpush1.msra.mxu0 0.0
  %1078 = vmatprep.subr.mxu0 0.0
  %1079 = vmatpush1.msra.mxu0 0.0
  %1080 = vmatprep.subr.mxu0 0.0
  %1081 = vmatpush1.msra.mxu0 0.0
  %1082 = vmatprep.subr.mxu0 0.0
  %1083 = vmatpush1.msra.mxu0 0.0
  %1084 = vmatprep.subr.mxu0 0.0
  %1085 = vmatpush1.msra.mxu0 0.0
  %1086 = vmatprep.subr.mxu0 0.0
  %1087 = vmatpush1.msra.mxu0 0.0
  %1088 = vmatprep.subr.mxu0 0.0
  %1089 = vmatpush1.msra.mxu0 0.0
  %1090 = vmatprep.mubr.f32.mxu0 0.0
  %1091 = vmatmul.mubr.f32.gmra.mrb[0].mxu0 %v1024
  %v1092 = vpop.f32.mrb[0].mxu0
  %v1093 = vadd.f32 0.0, %v1092
  %v1094 = vpop.f32.mrb[0].mxu0
  %1095 = vdwg.mxu0
  %v1097 = vrot.slane %v1093, 2
  %v1099 = vadd.f32 %v133, %v1097
  %v1100 = vxor.u32 %v1099, 2147483648
  %v1101 = vmul.f32 %v1100, 1.442695
  %v1102 = vpow.pop %v1101
  %v1103 = vadd.f32 %v1102, 1.0
  %v1104 = vrcp.pop %v1103
  %v1105 = vmul.f32 1.0, %v1104
  %v1106 = vadd.f32 %v1093, %v229
  %v1108 = vrot.slane %v1106, 2
  %1109 = vrot.lane.b32.xlu0 %v1108, 64
  %v1110 = vpop.permute.xlu0 %1109
  %v1112 = vmul.f32 %v1105, %v1110
  %1114 = vrot.lane.b32.xlu0 %v1112, 64
  %v1115 = vpop.permute.xlu0 %1114
  %v1117 = vadd.f32 %v133, %v1115
  %v1118 = vtanh.pop %v1117
  %v1119 = vsub.f32 1.0, %v1105
  %1121 = vrot.lane.b32.xlu0 %v1118, 96
  %v1122 = vpop.permute.xlu0 %1121
  %v1124 = vmul.f32 %v1119, %v1122
  %v1125 = vrot.slane %v1014, 6
  %v1127 = vmul.f32 %v1105, %v1125
  %v1128 = vadd.f32 %v1124, %v1127
  %v1129 = vmul.f32 %v752, %v1128
  %1130 = vrot.lane.b32.xlu0 %v1125, 96
  %v1131 = vpop.permute.xlu0 %1130
  %v1133 = vmul.f32 %v759, %v1131
  %1135 = vrot.lane.b32.xlu0 %v1133, 32
  %v1136 = vpop.permute.xlu0 %1135
  %v1138 = vadd.f32 %v1129, %v1136
  %1140 = vrot.lane.b32.xlu0 %v1129, 96
  %v1141 = vpop.permute.xlu0 %1140
  %1143 = vst.msk [vmem:[#allocation2 + $0x8] sm:$0xc0] %vm643, %v1141
  %v1144 = vld [vmem:[#allocation2] sm:$0xff]
  %v1145 = vld [vmem:[#allocation2 + $0x8] sm:$0xff]
  %v1146 = vld [vmem:[%s2] sm:$0xff]
  %v1147 = vld [vmem:[%s2 + $0x8] sm:$0xff]
  %v1148 = vld [vmem:[%s9] sm:$0x1]
  %v1149 = vld [vmem:[%s7] sm:$0xff]
  %v1150 = vld [vmem:[%s7 + $0x8] sm:$0xff]
  %v1151 = vld [vmem:[%s7 + $0x10] sm:$0xff]
  %v1152 = vld [vmem:[%s7 + $0x18] sm:$0xff]
  %v1154 = vsel %vm54, %v1144, 0
  %v1157 = vsel %vm54, %v1145, 0
  %1159 = vmatprep.subr.mxu0 0.0
  %1160 = vmatpush1.msra.mxu0 %v1149
  %1161 = vmatprep.subr.mxu0 0.0
  %1162 = vmatpush1.msra.mxu0 %v1150
  %1163 = vmatprep.subr.mxu0 0.0
  %1164 = vmatpush1.msra.mxu0 %v1151
  %1165 = vmatprep.subr.mxu0 0.0
  %1166 = vmatpush1.msra.mxu0 %v1152
  %1167 = vmatprep.subr.mxu0 0.0
  %1168 = vmatpush1.msra.mxu0 0.0
  %1169 = vmatprep.subr.mxu0 0.0
  %1170 = vmatpush1.msra.mxu0 0.0
  %1171 = vmatprep.subr.mxu0 0.0
  %1172 = vmatpush1.msra.mxu0 0.0
  %1173 = vmatprep.subr.mxu0 0.0
  %1174 = vmatpush1.msra.mxu0 0.0
  %1175 = vmatprep.subr.mxu0 0.0
  %1176 = vmatpush1.msra.mxu0 0.0
  %1177 = vmatprep.subr.mxu0 0.0
  %1178 = vmatpush1.msra.mxu0 0.0
  %1179 = vmatprep.subr.mxu0 0.0
  %1180 = vmatpush1.msra.mxu0 0.0
  %1181 = vmatprep.subr.mxu0 0.0
  %1182 = vmatpush1.msra.mxu0 0.0
  %1183 = vmatprep.subr.mxu0 0.0
  %1184 = vmatpush1.msra.mxu0 0.0
  %1185 = vmatprep.subr.mxu0 0.0
  %1186 = vmatpush1.msra.mxu0 0.0
  %1187 = vmatprep.subr.mxu0 0.0
  %1188 = vmatpush1.msra.mxu0 0.0
  %1189 = vmatprep.subr.mxu0 0.0
  %1190 = vmatpush1.msra.mxu0 0.0
  %1191 = vmatprep.subr.mxu0 0.0
  %1192 = vmatpush1.msra.mxu0 0.0
  %1193 = vmatprep.subr.mxu0 0.0
  %1194 = vmatpush1.msra.mxu0 0.0
  %1195 = vmatprep.subr.mxu0 0.0
  %1196 = vmatpush1.msra.mxu0 0.0
  %1197 = vmatprep.subr.mxu0 0.0
  %1198 = vmatpush1.msra.mxu0 0.0
  %1199 = vmatprep.subr.mxu0 0.0
  %1200 = vmatpush1.msra.mxu0 0.0
  %1201 = vmatprep.subr.mxu0 0.0
  %1202 = vmatpush1.msra.mxu0 0.0
  %1203 = vmatprep.subr.mxu0 0.0
  %1204 = vmatpush1.msra.mxu0 0.0
  %1205 = vmatprep.subr.mxu0 0.0
  %1206 = vmatpush1.msra.mxu0 0.0
  %1207 = vmatprep.subr.mxu0 0.0
  %1208 = vmatpush1.msra.mxu0 0.0
  %1209 = vmatprep.subr.mxu0 0.0
  %1210 = vmatpush1.msra.mxu0 0.0
  %1211 = vmatprep.subr.mxu0 0.0
  %1212 = vmatpush1.msra.mxu0 0.0
  %1213 = vmatprep.subr.mxu0 0.0
  %1214 = vmatpush1.msra.mxu0 0.0
  %1215 = vmatprep.subr.mxu0 0.0
  %1216 = vmatpush1.msra.mxu0 0.0
  %1217 = vmatprep.subr.mxu0 0.0
  %1218 = vmatpush1.msra.mxu0 0.0
  %1219 = vmatprep.subr.mxu0 0.0
  %1220 = vmatpush1.msra.mxu0 0.0
  %1221 = vmatprep.subr.mxu0 0.0
  %1222 = vmatpush1.msra.mxu0 0.0
  %1223 = vmatprep.mubr.f32.mxu0 0.0
  %1224 = vmatmul.mubr.f32.gmra.mrb[0].mxu0 %v1154
  %v1225 = vpop.f32.mrb[0].mxu0
  %v1226 = vadd.f32 0.0, %v1225
  %v1227 = vpop.f32.mrb[0].mxu0
  %1228 = vmatprep.mubr.f32.mxu0 0.0
  %1229 = vmatmul.mubr.f32.gmra.mrb[0].mxu0 %v1157
  %v1230 = vpop.f32.mrb[0].mxu0
  %v1231 = vadd.f32 0.0, %v1230
  %v1232 = vpop.f32.mrb[0].mxu0
  %1233 = vdwg.mxu0
  %v1234 = vld [vmem:[%s8] sm:$0xff]
  %v1235 = vld [vmem:[%s8 + $0x8] sm:$0xff]
  %v1236 = vld [vmem:[%s8 + $0x10] sm:$0xff]
  %v1237 = vld [vmem:[%s8 + $0x18] sm:$0xff]
  %v1239 = vrot.slane %v1138, 6
  %1240 = vrot.lane.b32.xlu0 %v1239, 96
  %v1241 = vpop.permute.xlu0 %1240
  %v1242 = vsel %vm54, %v1241, 0
  %1244 = vmatprep.subr.mxu0 0.0
  %1245 = vmatpush1.msra.mxu0 %v1234
  %1246 = vmatprep.subr.mxu0 0.0
  %1247 = vmatpush1.msra.mxu0 %v1235
  %1248 = vmatprep.subr.mxu0 0.0
  %1249 = vmatpush1.msra.mxu0 %v1236
  %1250 = vmatprep.subr.mxu0 0.0
  %1251 = vmatpush1.msra.mxu0 %v1237
  %1252 = vmatprep.subr.mxu0 0.0
  %1253 = vmatpush1.msra.mxu0 0.0
  %1254 = vmatprep.subr.mxu0 0.0
  %1255 = vmatpush1.msra.mxu0 0.0
  %1256 = vmatprep.subr.mxu0 0.0
  %1257 = vmatpush1.msra.mxu0 0.0
  %1258 = vmatprep.subr.mxu0 0.0
  %1259 = vmatpush1.msra.mxu0 0.0
  %1260 = vmatprep.subr.mxu0 0.0
  %1261 = vmatpush1.msra.mxu0 0.0
  %1262 = vmatprep.subr.mxu0 0.0
  %1263 = vmatpush1.msra.mxu0 0.0
  %1264 = vmatprep.subr.mxu0 0.0
  %1265 = vmatpush1.msra.mxu0 0.0
  %1266 = vmatprep.subr.mxu0 0.0
  %1267 = vmatpush1.msra.mxu0 0.0
  %1268 = vmatprep.subr.mxu0 0.0
  %1269 = vmatpush1.msra.mxu0 0.0
  %1270 = vmatprep.subr.mxu0 0.0
  %1271 = vmatpush1.msra.mxu0 0.0
  %1272 = vmatprep.subr.mxu0 0.0
  %1273 = vmatpush1.msra.mxu0 0.0
  %1274 = vmatprep.subr.mxu0 0.0
  %1275 = vmatpush1.msra.mxu0 0.0
  %1276 = vmatprep.subr.mxu0 0.0
  %1277 = vmatpush1.msra.mxu0 0.0
  %1278 = vmatprep.subr.mxu0 0.0
  %1279 = vmatpush1.msra.mxu0 0.0
  %1280 = vmatprep.subr.mxu0 0.0
  %1281 = vmatpush1.msra.mxu0 0.0
  %1282 = vmatprep.subr.mxu0 0.0
  %1283 = vmatpush1.msra.mxu0 0.0
  %1284 = vmatprep.subr.mxu0 0.0
  %1285 = vmatpush1.msra.mxu0 0.0
  %1286 = vmatprep.subr.mxu0 0.0
  %1287 = vmatpush1.msra.mxu0 0.0
  %1288 = vmatprep.subr.mxu0 0.0
  %1289 = vmatpush1.msra.mxu0 0.0
  %1290 = vmatprep.subr.mxu0 0.0
  %1291 = vmatpush1.msra.mxu0 0.0
  %1292 = vmatprep.subr.mxu0 0.0
  %1293 = vmatpush1.msra.mxu0 0.0
  %1294 = vmatprep.subr.mxu0 0.0
  %1295 = vmatpush1.msra.mxu0 0.0
  %1296 = vmatprep.subr.mxu0 0.0
  %1297 = vmatpush1.msra.mxu0 0.0
  %1298 = vmatprep.subr.mxu0 0.0
  %1299 = vmatpush1.msra.mxu0 0.0
  %1300 = vmatprep.subr.mxu0 0.0
  %1301 = vmatpush1.msra.mxu0 0.0
  %1302 = vmatprep.subr.mxu0 0.0
  %1303 = vmatpush1.msra.mxu0 0.0
  %1304 = vmatprep.subr.mxu0 0.0
  %1305 = vmatpush1.msra.mxu0 0.0
  %1306 = vmatprep.subr.mxu0 0.0
  %1307 = vmatpush1.msra.mxu0 0.0
  %1308 = vmatprep.mubr.f32.mxu0 0.0
  %1309 = vmatmul.mubr.f32.gmra.mrb[0].mxu0 %v1242
  %v1310 = vpop.f32.mrb[0].mxu0
  %v1311 = vadd.f32 0.0, %v1310
  %v1312 = vpop.f32.mrb[0].mxu0
  %1313 = vdwg.mxu0
  %1315 = vset.pattern.permute.xlu0 0
  %1316 = vperm.xlu0 %1315, %v1146
  %v1317 = vpop.permute.xlu0 %1316
  %v1319 = vmul.f32 %v1317, %v1311
  %v1320 = vadd.f32 %v1226, %v1319
  %v1321 = vxor.u32 %v1320, 2147483648
  %v1322 = vmul.f32 %v1321, 1.442695
  %v1323 = vpow.pop %v1322
  %v1324 = vadd.f32 %v1323, 1.0
  %v1325 = vrcp.pop %v1324
  %v1326 = vmul.f32 1.0, %v1325
  %v1328 = vlaneseq
  %v1329 = vshrl.u32 %v1328, 7
  %v1330 = vsub.s32 0, %v1329
  %v1331 = vrot.slane %v1148, %v1330
  %v1333 = vmul.f32 %v1326, %v1331
  %v1334 = vsel %vm269, %v1333, 0.0
  %1335 = vadd.xlane.f32.xlu0 %v1334
  %v1336 = vpop.xlane.xlu0 %1335
  %v1337 = vmul.f32 %v1336, %v1144
  %v1338 = vadd.f32 %v1337, 0.0
  %v1340 = vrot.slane %v1311, 6
  %v1342 = vmul.f32 %v1317, %v1340
  %v1343 = vadd.f32 %v1226, %v1342
  %v1344 = vxor.u32 %v1343, 2147483648
  %v1345 = vmul.f32 %v1344, 1.442695
  %v1346 = vpow.pop %v1345
  %v1347 = vadd.f32 %v1346, 1.0
  %v1348 = vrcp.pop %v1347
  %v1349 = vmul.f32 1.0, %v1348
  %v1350 = vmul.f32 %v1349, %v1331
  %v1351 = vsel %vm393, %v1350, 0.0
  %1352 = vadd.xlane.f32.xlu0 %v1351
  %v1353 = vpop.xlane.xlu0 %1352
  %v1354 = vmul.f32 %v1353, %v1144
  %v1356 = vrot.slane %v1354, 2
  %v1358 = vadd.f32 %v1338, %v1356
  %v1359 = vrot.slane %v1311, 4
  %v1361 = vmul.f32 %v1317, %v1359
  %v1362 = vadd.f32 %v1226, %v1361
  %v1363 = vxor.u32 %v1362, 2147483648
  %v1364 = vmul.f32 %v1363, 1.442695
  %v1365 = vpow.pop %v1364
  %v1366 = vadd.f32 %v1365, 1.0
  %v1367 = vrcp.pop %v1366
  %v1368 = vmul.f32 1.0, %v1367
  %v1369 = vmul.f32 %v1368, %v1331
  %v1370 = vsel %vm518, %v1369, 0.0
  %1371 = vadd.xlane.f32.xlu0 %v1370
  %v1372 = vpop.xlane.xlu0 %1371
  %v1373 = vmul.f32 %v1372, %v1144
  %v1375 = vrot.slane %v1373, 4
  %v1377 = vadd.f32 %v1358, %v1375
  %v1378 = vrot.slane %v1311, 2
  %v1380 = vmul.f32 %v1317, %v1378
  %v1381 = vadd.f32 %v1226, %v1380
  %v1382 = vxor.u32 %v1381, 2147483648
  %v1383 = vmul.f32 %v1382, 1.442695
  %v1384 = vpow.pop %v1383
  %v1385 = vadd.f32 %v1384, 1.0
  %v1386 = vrcp.pop %v1385
  %v1387 = vmul.f32 1.0, %v1386
  %v1388 = vmul.f32 %v1387, %v1331
  %v1389 = vsel %vm643, %v1388, 0.0
  %1390 = vadd.xlane.f32.xlu0 %v1389
  %v1391 = vpop.xlane.xlu0 %1390
  %v1392 = vmul.f32 %v1391, %v1144
  %v1394 = vrot.slane %v1392, 6
  %v1396 = vadd.f32 %v1377, %v1394
  %1398 = vset.pattern.permute.xlu0 0
  %1399 = vperm.xlu0 %1398, %v1147
  %v1400 = vpop.permute.xlu0 %1399
  %v1402 = vmul.f32 %v1400, %v1311
  %v1403 = vadd.f32 %v1231, %v1402
  %v1404 = vxor.u32 %v1403, 2147483648
  %v1405 = vmul.f32 %v1404, 1.442695
  %v1406 = vpow.pop %v1405
  %v1407 = vadd.f32 %v1406, 1.0
  %v1408 = vrcp.pop %v1407
  %v1409 = vmul.f32 1.0, %v1408
  %v1410 = vmul.f32 %v1409, %v1331
  %v1411 = vsel %vm269, %v1410, 0.0
  %1412 = vadd.xlane.f32.xlu0 %v1411
  %v1413 = vpop.xlane.xlu0 %1412
  %v1414 = vmul.f32 %v1413, %v1145
  %v1415 = vadd.f32 %v1396, %v1414
  %v1416 = vmul.f32 %v1400, %v1340
  %v1417 = vadd.f32 %v1231, %v1416
  %v1418 = vxor.u32 %v1417, 2147483648
  %v1419 = vmul.f32 %v1418, 1.442695
  %v1420 = vpow.pop %v1419
  %v1421 = vadd.f32 %v1420, 1.0
  %v1422 = vrcp.pop %v1421
  %v1423 = vmul.f32 1.0, %v1422
  %v1424 = vmul.f32 %v1423, %v1331
  %v1425 = vsel %vm393, %v1424, 0.0
  %1426 = vadd.xlane.f32.xlu0 %v1425
  %v1427 = vpop.xlane.xlu0 %1426
  %v1428 = vmul.f32 %v1427, %v1145
  %v1430 = vrot.slane %v1428, 2
  %v1432 = vadd.f32 %v1415, %v1430
  %v1433 = vmul.f32 %v1400, %v1359
  %v1434 = vadd.f32 %v1231, %v1433
  %v1435 = vxor.u32 %v1434, 2147483648
  %v1436 = vmul.f32 %v1435, 1.442695
  %v1437 = vpow.pop %v1436
  %v1438 = vadd.f32 %v1437, 1.0
  %v1439 = vrcp.pop %v1438
  %v1440 = vmul.f32 1.0, %v1439
  %v1441 = vmul.f32 %v1440, %v1331
  %v1442 = vsel %vm518, %v1441, 0.0
  %1443 = vadd.xlane.f32.xlu0 %v1442
  %v1444 = vpop.xlane.xlu0 %1443
  %v1445 = vmul.f32 %v1444, %v1145
  %v1447 = vrot.slane %v1445, 4
  %v1449 = vadd.f32 %v1432, %v1447
  %v1450 = vmul.f32 %v1400, %v1378
  %v1451 = vadd.f32 %v1231, %v1450
  %v1452 = vxor.u32 %v1451, 2147483648
  %v1453 = vmul.f32 %v1452, 1.442695
  %v1454 = vpow.pop %v1453
  %v1455 = vadd.f32 %v1454, 1.0
  %v1456 = vrcp.pop %v1455
  %v1457 = vmul.f32 1.0, %v1456
  %v1458 = vmul.f32 %v1457, %v1331
  %v1459 = vsel %vm643, %v1458, 0.0
  %1460 = vadd.xlane.f32.xlu0 %v1459
  %v1461 = vpop.xlane.xlu0 %1460
  %v1462 = vmul.f32 %v1461, %v1145
  %v1464 = vrot.slane %v1462, 6
  %v1466 = vadd.f32 %v1449, %v1464
  %v1467 = vld [vmem:[%s10] sm:$0xff]
  %v1468 = vld [vmem:[%s10 + $0x8] sm:$0xff]
  %v1469 = vld [vmem:[%s10 + $0x10] sm:$0xff]
  %v1470 = vld [vmem:[%s10 + $0x18] sm:$0xff]
  %v1471 = vld [vmem:[%s11] sm:$0xff]
  %v1472 = vld [vmem:[%s11 + $0x8] sm:$0xff]
  %v1473 = vld [vmem:[%s11 + $0x10] sm:$0xff]
  %v1474 = vld [vmem:[%s11 + $0x18] sm:$0xff]
  %1475 = vmatprep.subr.mxu0 0.0
  %1476 = vmatpush1.msra.mxu0 %v1471
  %1477 = vmatprep.subr.mxu0 0.0
  %1478 = vmatpush1.msra.mxu0 %v1472
  %1479 = vmatprep.subr.mxu0 0.0
  %1480 = vmatpush1.msra.mxu0 %v1473
  %1481 = vmatprep.subr.mxu0 0.0
  %1482 = vmatpush1.msra.mxu0 %v1474
  %1483 = vmatprep.subr.mxu0 0.0
  %1484 = vmatpush1.msra.mxu0 0.0
  %1485 = vmatprep.subr.mxu0 0.0
  %1486 = vmatpush1.msra.mxu0 0.0
  %1487 = vmatprep.subr.mxu0 0.0
  %1488 = vmatpush1.msra.mxu0 0.0
  %1489 = vmatprep.subr.mxu0 0.0
  %1490 = vmatpush1.msra.mxu0 0.0
  %1491 = vmatprep.subr.mxu0 0.0
  %1492 = vmatpush1.msra.mxu0 0.0
  %1493 = vmatprep.subr.mxu0 0.0
  %1494 = vmatpush1.msra.mxu0 0.0
  %1495 = vmatprep.subr.mxu0 0.0
  %1496 = vmatpush1.msra.mxu0 0.0
  %1497 = vmatprep.subr.mxu0 0.0
  %1498 = vmatpush1.msra.mxu0 0.0
  %1499 = vmatprep.subr.mxu0 0.0
  %1500 = vmatpush1.msra.mxu0 0.0
  %1501 = vmatprep.subr.mxu0 0.0
  %1502 = vmatpush1.msra.mxu0 0.0
  %1503 = vmatprep.subr.mxu0 0.0
  %1504 = vmatpush1.msra.mxu0 0.0
  %1505 = vmatprep.subr.mxu0 0.0
  %1506 = vmatpush1.msra.mxu0 0.0
  %1507 = vmatprep.subr.mxu0 0.0
  %1508 = vmatpush1.msra.mxu0 0.0
  %1509 = vmatprep.subr.mxu0 0.0
  %1510 = vmatpush1.msra.mxu0 0.0
  %1511 = vmatprep.subr.mxu0 0.0
  %1512 = vmatpush1.msra.mxu0 0.0
  %1513 = vmatprep.subr.mxu0 0.0
  %1514 = vmatpush1.msra.mxu0 0.0
  %1515 = vmatprep.subr.mxu0 0.0
  %1516 = vmatpush1.msra.mxu0 0.0
  %1517 = vmatprep.subr.mxu0 0.0
  %1518 = vmatpush1.msra.mxu0 0.0
  %1519 = vmatprep.subr.mxu0 0.0
  %1520 = vmatpush1.msra.mxu0 0.0
  %1521 = vmatprep.subr.mxu0 0.0
  %1522 = vmatpush1.msra.mxu0 0.0
  %1523 = vmatprep.subr.mxu0 0.0
  %1524 = vmatpush1.msra.mxu0 0.0
  %1525 = vmatprep.subr.mxu0 0.0
  %1526 = vmatpush1.msra.mxu0 0.0
  %1527 = vmatprep.subr.mxu0 0.0
  %1528 = vmatpush1.msra.mxu0 0.0
  %1529 = vmatprep.subr.mxu0 0.0
  %1530 = vmatpush1.msra.mxu0 0.0
  %1531 = vmatprep.subr.mxu0 0.0
  %1532 = vmatpush1.msra.mxu0 0.0
  %1533 = vmatprep.subr.mxu0 0.0
  %1534 = vmatpush1.msra.mxu0 0.0
  %1535 = vmatprep.subr.mxu0 0.0
  %1536 = vmatpush1.msra.mxu0 0.0
  %1537 = vmatprep.subr.mxu0 0.0
  %1538 = vmatpush1.msra.mxu0 0.0
  %1539 = vmatprep.mubr.f32.mxu0 0.0
  %1540 = vmatmul.mubr.f32.gmra.mrb[0].mxu0 %v1242
  %v1541 = vpop.f32.mrb[0].mxu0
  %v1542 = vadd.f32 0.0, %v1541
  %v1543 = vpop.f32.mrb[0].mxu0
  %1544 = vdwg.mxu0
  %v1546 = vsel %vm54, %v1466, 0
  %1548 = vmatprep.subr.mxu0 0.0
  %1549 = vmatpush1.msra.mxu0 %v1467
  %1550 = vmatprep.subr.mxu0 0.0
  %1551 = vmatpush1.msra.mxu0 %v1468
  %1552 = vmatprep.subr.mxu0 0.0
  %1553 = vmatpush1.msra.mxu0 %v1469
  %1554 = vmatprep.subr.mxu0 0.0
  %1555 = vmatpush1.msra.mxu0 %v1470
  %1556 = vmatprep.subr.mxu0 0.0
  %1557 = vmatpush1.msra.mxu0 0.0
  %1558 = vmatprep.subr.mxu0 0.0
  %1559 = vmatpush1.msra.mxu0 0.0
  %1560 = vmatprep.subr.mxu0 0.0
  %1561 = vmatpush1.msra.mxu0 0.0
  %1562 = vmatprep.subr.mxu0 0.0
  %1563 = vmatpush1.msra.mxu0 0.0
  %1564 = vmatprep.subr.mxu0 0.0
  %1565 = vmatpush1.msra.mxu0 0.0
  %1566 = vmatprep.subr.mxu0 0.0
  %1567 = vmatpush1.msra.mxu0 0.0
  %1568 = vmatprep.subr.mxu0 0.0
  %1569 = vmatpush1.msra.mxu0 0.0
  %1570 = vmatprep.subr.mxu0 0.0
  %1571 = vmatpush1.msra.mxu0 0.0
  %1572 = vmatprep.subr.mxu0 0.0
  %1573 = vmatpush1.msra.mxu0 0.0
  %1574 = vmatprep.subr.mxu0 0.0
  %1575 = vmatpush1.msra.mxu0 0.0
  %1576 = vmatprep.subr.mxu0 0.0
  %1577 = vmatpush1.msra.mxu0 0.0
  %1578 = vmatprep.subr.mxu0 0.0
  %1579 = vmatpush1.msra.mxu0 0.0
  %1580 = vmatprep.subr.mxu0 0.0
  %1581 = vmatpush1.msra.mxu0 0.0
  %1582 = vmatprep.subr.mxu0 0.0
  %1583 = vmatpush1.msra.mxu0 0.0
  %1584 = vmatprep.subr.mxu0 0.0
  %1585 = vmatpush1.msra.mxu0 0.0
  %1586 = vmatprep.subr.mxu0 0.0
  %1587 = vmatpush1.msra.mxu0 0.0
  %1588 = vmatprep.subr.mxu0 0.0
  %1589 = vmatpush1.msra.mxu0 0.0
  %1590 = vmatprep.subr.mxu0 0.0
  %1591 = vmatpush1.msra.mxu0 0.0
  %1592 = vmatprep.subr.mxu0 0.0
  %1593 = vmatpush1.msra.mxu0 0.0
  %1594 = vmatprep.subr.mxu0 0.0
  %1595 = vmatpush1.msra.mxu0 0.0
  %1596 = vmatprep.subr.mxu0 0.0
  %1597 = vmatpush1.msra.mxu0 0.0
  %1598 = vmatprep.subr.mxu0 0.0
  %1599 = vmatpush1.msra.mxu0 0.0
  %1600 = vmatprep.subr.mxu0 0.0
  %1601 = vmatpush1.msra.mxu0 0.0
  %1602 = vmatprep.subr.mxu0 0.0
  %1603 = vmatpush1.msra.mxu0 0.0
  %1604 = vmatprep.subr.mxu0 0.0
  %1605 = vmatpush1.msra.mxu0 0.0
  %1606 = vmatprep.subr.mxu0 0.0
  %1607 = vmatpush1.msra.mxu0 0.0
  %1608 = vmatprep.subr.mxu0 0.0
  %1609 = vmatpush1.msra.mxu0 0.0
  %1610 = vmatprep.subr.mxu0 0.0
  %1611 = vmatpush1.msra.mxu0 0.0
  %1612 = vmatprep.mubr.f32.mxu0 0.0
  %1613 = vmatmul.mubr.f32.gmra.mrb[0].mxu0 %v1546
  %v1614 = vpop.f32.mrb[0].mxu0
  %v1615 = vadd.f32 %v1542, %v1614
  %v1616 = vpop.f32.mrb[0].mxu0
  %1617 = vdwg.mxu0
  %1618 = vst.msk [vmem:[%s12] sm:$0x3] %vm269, %v1615
  // Predicated region
  $region50: #{narm_forward.2} parent=0 // pred_check
    _
  $region51: #{narm_forward.2} parent=0 // pred_check_branch
    %1620 = sbr.rel (0) target = $region53
  $region52: #{narm_forward.2} parent=0 // pred_region
    _
  $region53: #{narm_forward.2} parent=0 // pred_fallthru
    _
  // Predicated region
  $region54: #{narm_forward.2} parent=0 // pred_check
    _
  $region55: #{narm_forward.2} parent=0 // pred_check_branch
    %1622 = sbr.rel (0) target = $region57
  $region56: #{narm_forward.2} parent=0 // pred_region
    _
  $region57: #{narm_forward.2} parent=0 // pred_fallthru
    _

</llo_original>
